<compile_context>
chip_gen: v6e
topology: v6e:2x2x1
jax: 0.10.0
libtpu: 0.0.40
codegen_flags: <defaults>
</compile_context>

<pallas_src>
import jax
import jax.numpy as jnp
from jax import lax
from jax.experimental import pallas as pl
from jax.experimental.pallas import tpu as pltpu


def _leaky(v):
    # nn.LeakyReLU default negative_slope = 0.01
    return jnp.where(v >= 0, v, 0.01 * v)


def make_landlord_forward(batch, channels, row, col, out_size):
    kh = kw = 2
    H1, W1 = row - 1, col - 1
    H2, W2 = H1 - 1, W1 - 1
    H3, W3 = H2 - 1, W2 - 1

    def kernel(x_ref, w1_ref, b1_ref, w2_ref, b2_ref, w3_ref, b3_ref,
               wl_ref, bl_ref, o_ref):
        x = x_ref[...]  # (B, row, col) float32

        # ---- conv1: 1 -> C, 2x2 valid, + leaky relu ----
        # Shifted views of x hoisted out of the output-channel loop (built once,
        # reused for every output channel).
        xv = [[x[:, dh:dh + H1, dw:dw + W1] for dw in range(kw)]
              for dh in range(kh)]
        y1 = []
        for c in range(channels):
            acc = jnp.full((batch, H1, W1), b1_ref[c], jnp.float32)
            for dh in range(kh):
                for dw in range(kw):
                    acc = acc + w1_ref[c, dh * kw + dw] * xv[dh][dw]
            y1.append(_leaky(acc))

        # ---- conv2: C -> C, 2x2 valid, + leaky relu ----
        # Input-channel-outer ordering: each shifted view of y1[ci] is built
        # exactly once and shared by all output channels (16 distinct views
        # instead of 64 re-traced slices), while keeping only one input
        # channel's views live at a time (bounds vreg pressure).
        acc2 = [jnp.full((batch, H2, W2), b2_ref[c], jnp.float32)
                for c in range(channels)]
        for ci in range(channels):
            yv = [[y1[ci][:, dh:dh + H2, dw:dw + W2] for dw in range(kw)]
                  for dh in range(kh)]
            for c in range(channels):
                for dh in range(kh):
                    for dw in range(kw):
                        acc2[c] = acc2[c] + \
                            w2_ref[c, ci * kh * kw + dh * kw + dw] * yv[dh][dw]
        y2 = [_leaky(a) for a in acc2]

        # ---- conv3: C -> 1, 2x2 valid, + leaky relu ----
        # Fold one y2 channel at a time into the single accumulator.
        acc3 = jnp.full((batch, H3, W3), b3_ref[0], jnp.float32)
        for ci in range(channels):
            for dh in range(kh):
                for dw in range(kw):
                    acc3 = acc3 + w3_ref[0, ci * kh * kw + dh * kw + dw] * \
                        y2[ci][:, dh:dh + H3, dw:dw + W3]
        y3 = _leaky(acc3)  # (B, H3, W3)

        # ---- flatten + linear: one fused MXU matmul with K = H3*W3 ----
        # (replaces the previous chain of H3 serialized per-row matmuls)
        flat = jnp.concatenate([y3[:, r, :] for r in range(H3)],
                               axis=1)  # (B, H3*W3), row-major like torch flatten
        raw = jnp.dot(flat, wl_ref[...],
                      preferred_element_type=jnp.float32) + bl_ref[...]
        raw = _leaky(raw)  # (B, out_size)

        # ---- head: softmax over the BATCH dim (dim=0) on all but last column ----
        logits = raw[:, :out_size - 1]
        m = jnp.max(logits, axis=0, keepdims=True)
        e = jnp.exp(logits - m)
        s = jnp.sum(e, axis=0, keepdims=True)
        # Two direct partial stores instead of a lane-concat before the store.
        o_ref[:, :out_size - 1] = e / s
        o_ref[:, out_size - 1:] = raw[:, out_size - 1:]

    # NOTE: with B=2 the kernel is pure fixed overhead; a batch-in-lanes
    # relayout (x as (row, col, B)) and a "parallel" grid over independent
    # game instances (for v7x's 2 TensorCores) only pay off at larger scale,
    # so they are intentionally not applied here.
    vmem = pltpu.MemorySpace.VMEM
    smem = pltpu.MemorySpace.SMEM
    return pl.pallas_call(
        kernel,
        out_shape=jax.ShapeDtypeStruct((batch, out_size), jnp.float32),
        in_specs=[
            pl.BlockSpec(memory_space=vmem),   # x       (B, row, col)
            pl.BlockSpec(memory_space=smem),   # w1      (C, 4)
            pl.BlockSpec(memory_space=smem),   # b1      (C,)
            pl.BlockSpec(memory_space=smem),   # w2      (C, C*4)
            pl.BlockSpec(memory_space=smem),   # b2      (C,)
            pl.BlockSpec(memory_space=smem),   # w3      (1, C*4)
            pl.BlockSpec(memory_space=smem),   # b3      (1,)
            pl.BlockSpec(memory_space=vmem),   # wl      (H3*W3, out) lane-dense 2D
            pl.BlockSpec(memory_space=vmem),   # bl      (1, out)
        ],
        out_specs=pl.BlockSpec(memory_space=vmem),
    )


def reference_forward(x_nchw, w1, b1, w2, b2, w3, b3, wl, bl):
    """Pure-JAX replica of the PyTorch forward, for verification."""
    def conv(x, w, b):
        y = lax.conv_general_dilated(
            x, w, window_strides=(1, 1), padding='VALID',
            dimension_numbers=('NCHW', 'OIHW', 'NCHW'),
            precision=lax.Precision.HIGHEST)
        return y + b[None, :, None, None]

    y = _leaky(conv(x_nchw, w1, b1))
    y = _leaky(conv(y, w2, b2))
    y = _leaky(conv(y, w3, b3))
    flat = y.reshape(y.shape[0], -1)
    raw = _leaky(jnp.dot(flat, wl.T, precision=lax.Precision.HIGHEST) + bl)
    sm = jax.nn.softmax(raw[:, :-1], axis=0)
    return jnp.concatenate([sm, raw[:, -1:]], axis=1)


if __name__ == "__main__":
    # Small config consistent with the module's forward.
    B, C, ROW, COL, OUT = 2, 4, 16, 16, 8
    H3, W3 = ROW - 3, COL - 3
    IN_TEMP = H3 * W3

    key = jax.random.PRNGKey(0)
    ks = jax.random.split(key, 10)
    f32 = jnp.float32

    # Deterministic synthetic parameters (shapes match the nn.Module layers).
    w1 = (jax.random.normal(ks[0], (C, 1, 2, 2), f32) * 0.1)
    b1 = (jax.random.normal(ks[1], (C,), f32) * 0.05)
    w2 = (jax.random.normal(ks[2], (C, C, 2, 2), f32) * 0.1)
    b2 = (jax.random.normal(ks[3], (C,), f32) * 0.05)
    w3 = (jax.random.normal(ks[4], (1, C, 2, 2), f32) * 0.1)
    b3 = (jax.random.normal(ks[5], (1,), f32) * 0.05)
    wl = (jax.random.normal(ks[6], (OUT, IN_TEMP), f32) * 0.1)
    bl = (jax.random.normal(ks[7], (OUT,), f32) * 0.05)

    # Example input, NCHW with a single input channel.
    x = jax.random.normal(ks[8], (B, 1, ROW, COL), f32)

    # Repack parameters for the kernel.
    x_k = x[:, 0, :, :]                      # (B, ROW, COL)
    w1_k = w1.reshape(C, 4)                  # (C, 4)
    w2_k = w2.reshape(C, C * 4)              # (C, C*4)
    w3_k = w3.reshape(1, C * 4)              # (1, C*4)
    wl_k = wl.T                              # (H3*W3, OUT) lane-dense 2D
    bl_k = bl.reshape(1, OUT)                # (1, OUT)

    fwd = make_landlord_forward(B, C, ROW, COL, OUT)
    out = fwd(x_k, w1_k, b1, w2_k, b2, w3_k, b3, wl_k, bl_k)
    out = jax.block_until_ready(out)

    ref = jax.block_until_ready(
        reference_forward(x, w1, b1, w2, b2, w3, b3, wl, bl))

    assert out.shape == (B, OUT), out.shape
    assert jnp.allclose(out, ref, rtol=1e-3, atol=1e-4), (out, ref)
    print("KERNEL_OK")
</pallas_src>

<mosaic_0001>
module attributes {stable_mosaic.version = 11 : i64} {
  func.func @kernel(%arg0: memref<2x16x16xf32, #tpu.memory_space<vmem>>, %arg1: memref<4x4xf32, #tpu.memory_space<smem>>, %arg2: memref<4xf32, #tpu.memory_space<smem>>, %arg3: memref<4x16xf32, #tpu.memory_space<smem>>, %arg4: memref<4xf32, #tpu.memory_space<smem>>, %arg5: memref<1x16xf32, #tpu.memory_space<smem>>, %arg6: memref<1xf32, #tpu.memory_space<smem>>, %arg7: memref<169x8xf32, #tpu.memory_space<vmem>>, %arg8: memref<1x8xf32, #tpu.memory_space<vmem>>, %arg9: memref<2x8xf32, #tpu.memory_space<vmem>>) attributes {dimension_semantics = [], scalar_prefetch = 0 : i64, scratch_operands = 0 : i64, tpu.core_type = #tpu.core_type<tc>} {
    %c0 = arith.constant 0 : index
    %c0_0 = arith.constant 0 : index
    %c0_1 = arith.constant 0 : index
    %0 = vector.load %arg0[%c0, %c0_0, %c0_1] : memref<2x16x16xf32, #tpu.memory_space<vmem>>, vector<2x16x16xf32>
    %1 = vector.extract_strided_slice %0 {offsets = [0, 0, 0], sizes = [2, 15, 15], strides = [1, 1, 1]} : vector<2x16x16xf32> to vector<2x15x15xf32>
    %2 = vector.extract_strided_slice %0 {offsets = [0, 0, 1], sizes = [2, 15, 15], strides = [1, 1, 1]} : vector<2x16x16xf32> to vector<2x15x15xf32>
    %3 = vector.extract_strided_slice %0 {offsets = [0, 1, 0], sizes = [2, 15, 15], strides = [1, 1, 1]} : vector<2x16x16xf32> to vector<2x15x15xf32>
    %4 = vector.extract_strided_slice %0 {offsets = [0, 1, 1], sizes = [2, 15, 15], strides = [1, 1, 1]} : vector<2x16x16xf32> to vector<2x15x15xf32>
    %c0_2 = arith.constant 0 : index
    %5 = memref.load %arg2[%c0_2] : memref<4xf32, #tpu.memory_space<smem>>
    %6 = vector.broadcast %5 : f32 to vector<2x15x15xf32>
    %c0_3 = arith.constant 0 : index
    %c0_4 = arith.constant 0 : index
    %7 = memref.load %arg1[%c0_3, %c0_4] : memref<4x4xf32, #tpu.memory_space<smem>>
    %8 = vector.broadcast %7 : f32 to vector<2x15x15xf32>
    %9 = arith.mulf %8, %1 : vector<2x15x15xf32>
    %10 = arith.addf %6, %9 : vector<2x15x15xf32>
    %c0_5 = arith.constant 0 : index
    %c1 = arith.constant 1 : index
    %11 = memref.load %arg1[%c0_5, %c1] : memref<4x4xf32, #tpu.memory_space<smem>>
    %12 = vector.broadcast %11 : f32 to vector<2x15x15xf32>
    %13 = arith.mulf %12, %2 : vector<2x15x15xf32>
    %14 = arith.addf %10, %13 : vector<2x15x15xf32>
    %c0_6 = arith.constant 0 : index
    %c2 = arith.constant 2 : index
    %15 = memref.load %arg1[%c0_6, %c2] : memref<4x4xf32, #tpu.memory_space<smem>>
    %16 = vector.broadcast %15 : f32 to vector<2x15x15xf32>
    %17 = arith.mulf %16, %3 : vector<2x15x15xf32>
    %18 = arith.addf %14, %17 : vector<2x15x15xf32>
    %c0_7 = arith.constant 0 : index
    %c3 = arith.constant 3 : index
    %19 = memref.load %arg1[%c0_7, %c3] : memref<4x4xf32, #tpu.memory_space<smem>>
    %20 = vector.broadcast %19 : f32 to vector<2x15x15xf32>
    %21 = arith.mulf %20, %4 : vector<2x15x15xf32>
    %22 = arith.addf %18, %21 : vector<2x15x15xf32>
    %cst = arith.constant 0.000000e+00 : f32
    %23 = vector.broadcast %cst : f32 to vector<2x15x15xf32>
    %24 = arith.cmpf oge, %22, %23 : vector<2x15x15xf32>
    %cst_8 = arith.constant 0.00999999977 : f32
    %25 = vector.broadcast %cst_8 : f32 to vector<2x15x15xf32>
    %26 = arith.mulf %25, %22 : vector<2x15x15xf32>
    %27 = arith.select %24, %22, %26 : vector<2x15x15xi1>, vector<2x15x15xf32>
    %c1_9 = arith.constant 1 : index
    %28 = memref.load %arg2[%c1_9] : memref<4xf32, #tpu.memory_space<smem>>
    %29 = vector.broadcast %28 : f32 to vector<2x15x15xf32>
    %c1_10 = arith.constant 1 : index
    %c0_11 = arith.constant 0 : index
    %30 = memref.load %arg1[%c1_10, %c0_11] : memref<4x4xf32, #tpu.memory_space<smem>>
    %31 = vector.broadcast %30 : f32 to vector<2x15x15xf32>
    %32 = arith.mulf %31, %1 : vector<2x15x15xf32>
    %33 = arith.addf %29, %32 : vector<2x15x15xf32>
    %c1_12 = arith.constant 1 : index
    %c1_13 = arith.constant 1 : index
    %34 = memref.load %arg1[%c1_12, %c1_13] : memref<4x4xf32, #tpu.memory_space<smem>>
    %35 = vector.broadcast %34 : f32 to vector<2x15x15xf32>
    %36 = arith.mulf %35, %2 : vector<2x15x15xf32>
    %37 = arith.addf %33, %36 : vector<2x15x15xf32>
    %c1_14 = arith.constant 1 : index
    %c2_15 = arith.constant 2 : index
    %38 = memref.load %arg1[%c1_14, %c2_15] : memref<4x4xf32, #tpu.memory_space<smem>>
    %39 = vector.broadcast %38 : f32 to vector<2x15x15xf32>
    %40 = arith.mulf %39, %3 : vector<2x15x15xf32>
    %41 = arith.addf %37, %40 : vector<2x15x15xf32>
    %c1_16 = arith.constant 1 : index
    %c3_17 = arith.constant 3 : index
    %42 = memref.load %arg1[%c1_16, %c3_17] : memref<4x4xf32, #tpu.memory_space<smem>>
    %43 = vector.broadcast %42 : f32 to vector<2x15x15xf32>
    %44 = arith.mulf %43, %4 : vector<2x15x15xf32>
    %45 = arith.addf %41, %44 : vector<2x15x15xf32>
    %cst_18 = arith.constant 0.000000e+00 : f32
    %46 = vector.broadcast %cst_18 : f32 to vector<2x15x15xf32>
    %47 = arith.cmpf oge, %45, %46 : vector<2x15x15xf32>
    %cst_19 = arith.constant 0.00999999977 : f32
    %48 = vector.broadcast %cst_19 : f32 to vector<2x15x15xf32>
    %49 = arith.mulf %48, %45 : vector<2x15x15xf32>
    %50 = arith.select %47, %45, %49 : vector<2x15x15xi1>, vector<2x15x15xf32>
    %c2_20 = arith.constant 2 : index
    %51 = memref.load %arg2[%c2_20] : memref<4xf32, #tpu.memory_space<smem>>
    %52 = vector.broadcast %51 : f32 to vector<2x15x15xf32>
    %c2_21 = arith.constant 2 : index
    %c0_22 = arith.constant 0 : index
    %53 = memref.load %arg1[%c2_21, %c0_22] : memref<4x4xf32, #tpu.memory_space<smem>>
    %54 = vector.broadcast %53 : f32 to vector<2x15x15xf32>
    %55 = arith.mulf %54, %1 : vector<2x15x15xf32>
    %56 = arith.addf %52, %55 : vector<2x15x15xf32>
    %c2_23 = arith.constant 2 : index
    %c1_24 = arith.constant 1 : index
    %57 = memref.load %arg1[%c2_23, %c1_24] : memref<4x4xf32, #tpu.memory_space<smem>>
    %58 = vector.broadcast %57 : f32 to vector<2x15x15xf32>
    %59 = arith.mulf %58, %2 : vector<2x15x15xf32>
    %60 = arith.addf %56, %59 : vector<2x15x15xf32>
    %c2_25 = arith.constant 2 : index
    %c2_26 = arith.constant 2 : index
    %61 = memref.load %arg1[%c2_25, %c2_26] : memref<4x4xf32, #tpu.memory_space<smem>>
    %62 = vector.broadcast %61 : f32 to vector<2x15x15xf32>
    %63 = arith.mulf %62, %3 : vector<2x15x15xf32>
    %64 = arith.addf %60, %63 : vector<2x15x15xf32>
    %c2_27 = arith.constant 2 : index
    %c3_28 = arith.constant 3 : index
    %65 = memref.load %arg1[%c2_27, %c3_28] : memref<4x4xf32, #tpu.memory_space<smem>>
    %66 = vector.broadcast %65 : f32 to vector<2x15x15xf32>
    %67 = arith.mulf %66, %4 : vector<2x15x15xf32>
    %68 = arith.addf %64, %67 : vector<2x15x15xf32>
    %cst_29 = arith.constant 0.000000e+00 : f32
    %69 = vector.broadcast %cst_29 : f32 to vector<2x15x15xf32>
    %70 = arith.cmpf oge, %68, %69 : vector<2x15x15xf32>
    %cst_30 = arith.constant 0.00999999977 : f32
    %71 = vector.broadcast %cst_30 : f32 to vector<2x15x15xf32>
    %72 = arith.mulf %71, %68 : vector<2x15x15xf32>
    %73 = arith.select %70, %68, %72 : vector<2x15x15xi1>, vector<2x15x15xf32>
    %c3_31 = arith.constant 3 : index
    %74 = memref.load %arg2[%c3_31] : memref<4xf32, #tpu.memory_space<smem>>
    %75 = vector.broadcast %74 : f32 to vector<2x15x15xf32>
    %c3_32 = arith.constant 3 : index
    %c0_33 = arith.constant 0 : index
    %76 = memref.load %arg1[%c3_32, %c0_33] : memref<4x4xf32, #tpu.memory_space<smem>>
    %77 = vector.broadcast %76 : f32 to vector<2x15x15xf32>
    %78 = arith.mulf %77, %1 : vector<2x15x15xf32>
    %79 = arith.addf %75, %78 : vector<2x15x15xf32>
    %c3_34 = arith.constant 3 : index
    %c1_35 = arith.constant 1 : index
    %80 = memref.load %arg1[%c3_34, %c1_35] : memref<4x4xf32, #tpu.memory_space<smem>>
    %81 = vector.broadcast %80 : f32 to vector<2x15x15xf32>
    %82 = arith.mulf %81, %2 : vector<2x15x15xf32>
    %83 = arith.addf %79, %82 : vector<2x15x15xf32>
    %c3_36 = arith.constant 3 : index
    %c2_37 = arith.constant 2 : index
    %84 = memref.load %arg1[%c3_36, %c2_37] : memref<4x4xf32, #tpu.memory_space<smem>>
    %85 = vector.broadcast %84 : f32 to vector<2x15x15xf32>
    %86 = arith.mulf %85, %3 : vector<2x15x15xf32>
    %87 = arith.addf %83, %86 : vector<2x15x15xf32>
    %c3_38 = arith.constant 3 : index
    %c3_39 = arith.constant 3 : index
    %88 = memref.load %arg1[%c3_38, %c3_39] : memref<4x4xf32, #tpu.memory_space<smem>>
    %89 = vector.broadcast %88 : f32 to vector<2x15x15xf32>
    %90 = arith.mulf %89, %4 : vector<2x15x15xf32>
    %91 = arith.addf %87, %90 : vector<2x15x15xf32>
    %cst_40 = arith.constant 0.000000e+00 : f32
    %92 = vector.broadcast %cst_40 : f32 to vector<2x15x15xf32>
    %93 = arith.cmpf oge, %91, %92 : vector<2x15x15xf32>
    %cst_41 = arith.constant 0.00999999977 : f32
    %94 = vector.broadcast %cst_41 : f32 to vector<2x15x15xf32>
    %95 = arith.mulf %94, %91 : vector<2x15x15xf32>
    %96 = arith.select %93, %91, %95 : vector<2x15x15xi1>, vector<2x15x15xf32>
    %c0_42 = arith.constant 0 : index
    %97 = memref.load %arg4[%c0_42] : memref<4xf32, #tpu.memory_space<smem>>
    %98 = vector.broadcast %97 : f32 to vector<2x14x14xf32>
    %c1_43 = arith.constant 1 : index
    %99 = memref.load %arg4[%c1_43] : memref<4xf32, #tpu.memory_space<smem>>
    %100 = vector.broadcast %99 : f32 to vector<2x14x14xf32>
    %c2_44 = arith.constant 2 : index
    %101 = memref.load %arg4[%c2_44] : memref<4xf32, #tpu.memory_space<smem>>
    %102 = vector.broadcast %101 : f32 to vector<2x14x14xf32>
    %c3_45 = arith.constant 3 : index
    %103 = memref.load %arg4[%c3_45] : memref<4xf32, #tpu.memory_space<smem>>
    %104 = vector.broadcast %103 : f32 to vector<2x14x14xf32>
    %105 = vector.extract_strided_slice %27 {offsets = [0, 0, 0], sizes = [2, 14, 14], strides = [1, 1, 1]} : vector<2x15x15xf32> to vector<2x14x14xf32>
    %106 = vector.extract_strided_slice %27 {offsets = [0, 0, 1], sizes = [2, 14, 14], strides = [1, 1, 1]} : vector<2x15x15xf32> to vector<2x14x14xf32>
    %107 = vector.extract_strided_slice %27 {offsets = [0, 1, 0], sizes = [2, 14, 14], strides = [1, 1, 1]} : vector<2x15x15xf32> to vector<2x14x14xf32>
    %108 = vector.extract_strided_slice %27 {offsets = [0, 1, 1], sizes = [2, 14, 14], strides = [1, 1, 1]} : vector<2x15x15xf32> to vector<2x14x14xf32>
    %c0_46 = arith.constant 0 : index
    %c0_47 = arith.constant 0 : index
    %109 = memref.load %arg3[%c0_46, %c0_47] : memref<4x16xf32, #tpu.memory_space<smem>>
    %110 = vector.broadcast %109 : f32 to vector<2x14x14xf32>
    %111 = arith.mulf %110, %105 : vector<2x14x14xf32>
    %112 = arith.addf %98, %111 : vector<2x14x14xf32>
    %c0_48 = arith.constant 0 : index
    %c1_49 = arith.constant 1 : index
    %113 = memref.load %arg3[%c0_48, %c1_49] : memref<4x16xf32, #tpu.memory_space<smem>>
    %114 = vector.broadcast %113 : f32 to vector<2x14x14xf32>
    %115 = arith.mulf %114, %106 : vector<2x14x14xf32>
    %116 = arith.addf %112, %115 : vector<2x14x14xf32>
    %c0_50 = arith.constant 0 : index
    %c2_51 = arith.constant 2 : index
    %117 = memref.load %arg3[%c0_50, %c2_51] : memref<4x16xf32, #tpu.memory_space<smem>>
    %118 = vector.broadcast %117 : f32 to vector<2x14x14xf32>
    %119 = arith.mulf %118, %107 : vector<2x14x14xf32>
    %120 = arith.addf %116, %119 : vector<2x14x14xf32>
    %c0_52 = arith.constant 0 : index
    %c3_53 = arith.constant 3 : index
    %121 = memref.load %arg3[%c0_52, %c3_53] : memref<4x16xf32, #tpu.memory_space<smem>>
    %122 = vector.broadcast %121 : f32 to vector<2x14x14xf32>
    %123 = arith.mulf %122, %108 : vector<2x14x14xf32>
    %124 = arith.addf %120, %123 : vector<2x14x14xf32>
    %c1_54 = arith.constant 1 : index
    %c0_55 = arith.constant 0 : index
    %125 = memref.load %arg3[%c1_54, %c0_55] : memref<4x16xf32, #tpu.memory_space<smem>>
    %126 = vector.broadcast %125 : f32 to vector<2x14x14xf32>
    %127 = arith.mulf %126, %105 : vector<2x14x14xf32>
    %128 = arith.addf %100, %127 : vector<2x14x14xf32>
    %c1_56 = arith.constant 1 : index
    %c1_57 = arith.constant 1 : index
    %129 = memref.load %arg3[%c1_56, %c1_57] : memref<4x16xf32, #tpu.memory_space<smem>>
    %130 = vector.broadcast %129 : f32 to vector<2x14x14xf32>
    %131 = arith.mulf %130, %106 : vector<2x14x14xf32>
    %132 = arith.addf %128, %131 : vector<2x14x14xf32>
    %c1_58 = arith.constant 1 : index
    %c2_59 = arith.constant 2 : index
    %133 = memref.load %arg3[%c1_58, %c2_59] : memref<4x16xf32, #tpu.memory_space<smem>>
    %134 = vector.broadcast %133 : f32 to vector<2x14x14xf32>
    %135 = arith.mulf %134, %107 : vector<2x14x14xf32>
    %136 = arith.addf %132, %135 : vector<2x14x14xf32>
    %c1_60 = arith.constant 1 : index
    %c3_61 = arith.constant 3 : index
    %137 = memref.load %arg3[%c1_60, %c3_61] : memref<4x16xf32, #tpu.memory_space<smem>>
    %138 = vector.broadcast %137 : f32 to vector<2x14x14xf32>
    %139 = arith.mulf %138, %108 : vector<2x14x14xf32>
    %140 = arith.addf %136, %139 : vector<2x14x14xf32>
    %c2_62 = arith.constant 2 : index
    %c0_63 = arith.constant 0 : index
    %141 = memref.load %arg3[%c2_62, %c0_63] : memref<4x16xf32, #tpu.memory_space<smem>>
    %142 = vector.broadcast %141 : f32 to vector<2x14x14xf32>
    %143 = arith.mulf %142, %105 : vector<2x14x14xf32>
    %144 = arith.addf %102, %143 : vector<2x14x14xf32>
    %c2_64 = arith.constant 2 : index
    %c1_65 = arith.constant 1 : index
    %145 = memref.load %arg3[%c2_64, %c1_65] : memref<4x16xf32, #tpu.memory_space<smem>>
    %146 = vector.broadcast %145 : f32 to vector<2x14x14xf32>
    %147 = arith.mulf %146, %106 : vector<2x14x14xf32>
    %148 = arith.addf %144, %147 : vector<2x14x14xf32>
    %c2_66 = arith.constant 2 : index
    %c2_67 = arith.constant 2 : index
    %149 = memref.load %arg3[%c2_66, %c2_67] : memref<4x16xf32, #tpu.memory_space<smem>>
    %150 = vector.broadcast %149 : f32 to vector<2x14x14xf32>
    %151 = arith.mulf %150, %107 : vector<2x14x14xf32>
    %152 = arith.addf %148, %151 : vector<2x14x14xf32>
    %c2_68 = arith.constant 2 : index
    %c3_69 = arith.constant 3 : index
    %153 = memref.load %arg3[%c2_68, %c3_69] : memref<4x16xf32, #tpu.memory_space<smem>>
    %154 = vector.broadcast %153 : f32 to vector<2x14x14xf32>
    %155 = arith.mulf %154, %108 : vector<2x14x14xf32>
    %156 = arith.addf %152, %155 : vector<2x14x14xf32>
    %c3_70 = arith.constant 3 : index
    %c0_71 = arith.constant 0 : index
    %157 = memref.load %arg3[%c3_70, %c0_71] : memref<4x16xf32, #tpu.memory_space<smem>>
    %158 = vector.broadcast %157 : f32 to vector<2x14x14xf32>
    %159 = arith.mulf %158, %105 : vector<2x14x14xf32>
    %160 = arith.addf %104, %159 : vector<2x14x14xf32>
    %c3_72 = arith.constant 3 : index
    %c1_73 = arith.constant 1 : index
    %161 = memref.load %arg3[%c3_72, %c1_73] : memref<4x16xf32, #tpu.memory_space<smem>>
    %162 = vector.broadcast %161 : f32 to vector<2x14x14xf32>
    %163 = arith.mulf %162, %106 : vector<2x14x14xf32>
    %164 = arith.addf %160, %163 : vector<2x14x14xf32>
    %c3_74 = arith.constant 3 : index
    %c2_75 = arith.constant 2 : index
    %165 = memref.load %arg3[%c3_74, %c2_75] : memref<4x16xf32, #tpu.memory_space<smem>>
    %166 = vector.broadcast %165 : f32 to vector<2x14x14xf32>
    %167 = arith.mulf %166, %107 : vector<2x14x14xf32>
    %168 = arith.addf %164, %167 : vector<2x14x14xf32>
    %c3_76 = arith.constant 3 : index
    %c3_77 = arith.constant 3 : index
    %169 = memref.load %arg3[%c3_76, %c3_77] : memref<4x16xf32, #tpu.memory_space<smem>>
    %170 = vector.broadcast %169 : f32 to vector<2x14x14xf32>
    %171 = arith.mulf %170, %108 : vector<2x14x14xf32>
    %172 = arith.addf %168, %171 : vector<2x14x14xf32>
    %173 = vector.extract_strided_slice %50 {offsets = [0, 0, 0], sizes = [2, 14, 14], strides = [1, 1, 1]} : vector<2x15x15xf32> to vector<2x14x14xf32>
    %174 = vector.extract_strided_slice %50 {offsets = [0, 0, 1], sizes = [2, 14, 14], strides = [1, 1, 1]} : vector<2x15x15xf32> to vector<2x14x14xf32>
    %175 = vector.extract_strided_slice %50 {offsets = [0, 1, 0], sizes = [2, 14, 14], strides = [1, 1, 1]} : vector<2x15x15xf32> to vector<2x14x14xf32>
    %176 = vector.extract_strided_slice %50 {offsets = [0, 1, 1], sizes = [2, 14, 14], strides = [1, 1, 1]} : vector<2x15x15xf32> to vector<2x14x14xf32>
    %c0_78 = arith.constant 0 : index
    %c4 = arith.constant 4 : index
    %177 = memref.load %arg3[%c0_78, %c4] : memref<4x16xf32, #tpu.memory_space<smem>>
    %178 = vector.broadcast %177 : f32 to vector<2x14x14xf32>
    %179 = arith.mulf %178, %173 : vector<2x14x14xf32>
    %180 = arith.addf %124, %179 : vector<2x14x14xf32>
    %c0_79 = arith.constant 0 : index
    %c5 = arith.constant 5 : index
    %181 = memref.load %arg3[%c0_79, %c5] : memref<4x16xf32, #tpu.memory_space<smem>>
    %182 = vector.broadcast %181 : f32 to vector<2x14x14xf32>
    %183 = arith.mulf %182, %174 : vector<2x14x14xf32>
    %184 = arith.addf %180, %183 : vector<2x14x14xf32>
    %c0_80 = arith.constant 0 : index
    %c6 = arith.constant 6 : index
    %185 = memref.load %arg3[%c0_80, %c6] : memref<4x16xf32, #tpu.memory_space<smem>>
    %186 = vector.broadcast %185 : f32 to vector<2x14x14xf32>
    %187 = arith.mulf %186, %175 : vector<2x14x14xf32>
    %188 = arith.addf %184, %187 : vector<2x14x14xf32>
    %c0_81 = arith.constant 0 : index
    %c7 = arith.constant 7 : index
    %189 = memref.load %arg3[%c0_81, %c7] : memref<4x16xf32, #tpu.memory_space<smem>>
    %190 = vector.broadcast %189 : f32 to vector<2x14x14xf32>
    %191 = arith.mulf %190, %176 : vector<2x14x14xf32>
    %192 = arith.addf %188, %191 : vector<2x14x14xf32>
    %c1_82 = arith.constant 1 : index
    %c4_83 = arith.constant 4 : index
    %193 = memref.load %arg3[%c1_82, %c4_83] : memref<4x16xf32, #tpu.memory_space<smem>>
    %194 = vector.broadcast %193 : f32 to vector<2x14x14xf32>
    %195 = arith.mulf %194, %173 : vector<2x14x14xf32>
    %196 = arith.addf %140, %195 : vector<2x14x14xf32>
    %c1_84 = arith.constant 1 : index
    %c5_85 = arith.constant 5 : index
    %197 = memref.load %arg3[%c1_84, %c5_85] : memref<4x16xf32, #tpu.memory_space<smem>>
    %198 = vector.broadcast %197 : f32 to vector<2x14x14xf32>
    %199 = arith.mulf %198, %174 : vector<2x14x14xf32>
    %200 = arith.addf %196, %199 : vector<2x14x14xf32>
    %c1_86 = arith.constant 1 : index
    %c6_87 = arith.constant 6 : index
    %201 = memref.load %arg3[%c1_86, %c6_87] : memref<4x16xf32, #tpu.memory_space<smem>>
    %202 = vector.broadcast %201 : f32 to vector<2x14x14xf32>
    %203 = arith.mulf %202, %175 : vector<2x14x14xf32>
    %204 = arith.addf %200, %203 : vector<2x14x14xf32>
    %c1_88 = arith.constant 1 : index
    %c7_89 = arith.constant 7 : index
    %205 = memref.load %arg3[%c1_88, %c7_89] : memref<4x16xf32, #tpu.memory_space<smem>>
    %206 = vector.broadcast %205 : f32 to vector<2x14x14xf32>
    %207 = arith.mulf %206, %176 : vector<2x14x14xf32>
    %208 = arith.addf %204, %207 : vector<2x14x14xf32>
    %c2_90 = arith.constant 2 : index
    %c4_91 = arith.constant 4 : index
    %209 = memref.load %arg3[%c2_90, %c4_91] : memref<4x16xf32, #tpu.memory_space<smem>>
    %210 = vector.broadcast %209 : f32 to vector<2x14x14xf32>
    %211 = arith.mulf %210, %173 : vector<2x14x14xf32>
    %212 = arith.addf %156, %211 : vector<2x14x14xf32>
    %c2_92 = arith.constant 2 : index
    %c5_93 = arith.constant 5 : index
    %213 = memref.load %arg3[%c2_92, %c5_93] : memref<4x16xf32, #tpu.memory_space<smem>>
    %214 = vector.broadcast %213 : f32 to vector<2x14x14xf32>
    %215 = arith.mulf %214, %174 : vector<2x14x14xf32>
    %216 = arith.addf %212, %215 : vector<2x14x14xf32>
    %c2_94 = arith.constant 2 : index
    %c6_95 = arith.constant 6 : index
    %217 = memref.load %arg3[%c2_94, %c6_95] : memref<4x16xf32, #tpu.memory_space<smem>>
    %218 = vector.broadcast %217 : f32 to vector<2x14x14xf32>
    %219 = arith.mulf %218, %175 : vector<2x14x14xf32>
    %220 = arith.addf %216, %219 : vector<2x14x14xf32>
    %c2_96 = arith.constant 2 : index
    %c7_97 = arith.constant 7 : index
    %221 = memref.load %arg3[%c2_96, %c7_97] : memref<4x16xf32, #tpu.memory_space<smem>>
    %222 = vector.broadcast %221 : f32 to vector<2x14x14xf32>
    %223 = arith.mulf %222, %176 : vector<2x14x14xf32>
    %224 = arith.addf %220, %223 : vector<2x14x14xf32>
    %c3_98 = arith.constant 3 : index
    %c4_99 = arith.constant 4 : index
    %225 = memref.load %arg3[%c3_98, %c4_99] : memref<4x16xf32, #tpu.memory_space<smem>>
    %226 = vector.broadcast %225 : f32 to vector<2x14x14xf32>
    %227 = arith.mulf %226, %173 : vector<2x14x14xf32>
    %228 = arith.addf %172, %227 : vector<2x14x14xf32>
    %c3_100 = arith.constant 3 : index
    %c5_101 = arith.constant 5 : index
    %229 = memref.load %arg3[%c3_100, %c5_101] : memref<4x16xf32, #tpu.memory_space<smem>>
    %230 = vector.broadcast %229 : f32 to vector<2x14x14xf32>
    %231 = arith.mulf %230, %174 : vector<2x14x14xf32>
    %232 = arith.addf %228, %231 : vector<2x14x14xf32>
    %c3_102 = arith.constant 3 : index
    %c6_103 = arith.constant 6 : index
    %233 = memref.load %arg3[%c3_102, %c6_103] : memref<4x16xf32, #tpu.memory_space<smem>>
    %234 = vector.broadcast %233 : f32 to vector<2x14x14xf32>
    %235 = arith.mulf %234, %175 : vector<2x14x14xf32>
    %236 = arith.addf %232, %235 : vector<2x14x14xf32>
    %c3_104 = arith.constant 3 : index
    %c7_105 = arith.constant 7 : index
    %237 = memref.load %arg3[%c3_104, %c7_105] : memref<4x16xf32, #tpu.memory_space<smem>>
    %238 = vector.broadcast %237 : f32 to vector<2x14x14xf32>
    %239 = arith.mulf %238, %176 : vector<2x14x14xf32>
    %240 = arith.addf %236, %239 : vector<2x14x14xf32>
    %241 = vector.extract_strided_slice %73 {offsets = [0, 0, 0], sizes = [2, 14, 14], strides = [1, 1, 1]} : vector<2x15x15xf32> to vector<2x14x14xf32>
    %242 = vector.extract_strided_slice %73 {offsets = [0, 0, 1], sizes = [2, 14, 14], strides = [1, 1, 1]} : vector<2x15x15xf32> to vector<2x14x14xf32>
    %243 = vector.extract_strided_slice %73 {offsets = [0, 1, 0], sizes = [2, 14, 14], strides = [1, 1, 1]} : vector<2x15x15xf32> to vector<2x14x14xf32>
    %244 = vector.extract_strided_slice %73 {offsets = [0, 1, 1], sizes = [2, 14, 14], strides = [1, 1, 1]} : vector<2x15x15xf32> to vector<2x14x14xf32>
    %c0_106 = arith.constant 0 : index
    %c8 = arith.constant 8 : index
    %245 = memref.load %arg3[%c0_106, %c8] : memref<4x16xf32, #tpu.memory_space<smem>>
    %246 = vector.broadcast %245 : f32 to vector<2x14x14xf32>
    %247 = arith.mulf %246, %241 : vector<2x14x14xf32>
    %248 = arith.addf %192, %247 : vector<2x14x14xf32>
    %c0_107 = arith.constant 0 : index
    %c9 = arith.constant 9 : index
    %249 = memref.load %arg3[%c0_107, %c9] : memref<4x16xf32, #tpu.memory_space<smem>>
    %250 = vector.broadcast %249 : f32 to vector<2x14x14xf32>
    %251 = arith.mulf %250, %242 : vector<2x14x14xf32>
    %252 = arith.addf %248, %251 : vector<2x14x14xf32>
    %c0_108 = arith.constant 0 : index
    %c10 = arith.constant 10 : index
    %253 = memref.load %arg3[%c0_108, %c10] : memref<4x16xf32, #tpu.memory_space<smem>>
    %254 = vector.broadcast %253 : f32 to vector<2x14x14xf32>
    %255 = arith.mulf %254, %243 : vector<2x14x14xf32>
    %256 = arith.addf %252, %255 : vector<2x14x14xf32>
    %c0_109 = arith.constant 0 : index
    %c11 = arith.constant 11 : index
    %257 = memref.load %arg3[%c0_109, %c11] : memref<4x16xf32, #tpu.memory_space<smem>>
    %258 = vector.broadcast %257 : f32 to vector<2x14x14xf32>
    %259 = arith.mulf %258, %244 : vector<2x14x14xf32>
    %260 = arith.addf %256, %259 : vector<2x14x14xf32>
    %c1_110 = arith.constant 1 : index
    %c8_111 = arith.constant 8 : index
    %261 = memref.load %arg3[%c1_110, %c8_111] : memref<4x16xf32, #tpu.memory_space<smem>>
    %262 = vector.broadcast %261 : f32 to vector<2x14x14xf32>
    %263 = arith.mulf %262, %241 : vector<2x14x14xf32>
    %264 = arith.addf %208, %263 : vector<2x14x14xf32>
    %c1_112 = arith.constant 1 : index
    %c9_113 = arith.constant 9 : index
    %265 = memref.load %arg3[%c1_112, %c9_113] : memref<4x16xf32, #tpu.memory_space<smem>>
    %266 = vector.broadcast %265 : f32 to vector<2x14x14xf32>
    %267 = arith.mulf %266, %242 : vector<2x14x14xf32>
    %268 = arith.addf %264, %267 : vector<2x14x14xf32>
    %c1_114 = arith.constant 1 : index
    %c10_115 = arith.constant 10 : index
    %269 = memref.load %arg3[%c1_114, %c10_115] : memref<4x16xf32, #tpu.memory_space<smem>>
    %270 = vector.broadcast %269 : f32 to vector<2x14x14xf32>
    %271 = arith.mulf %270, %243 : vector<2x14x14xf32>
    %272 = arith.addf %268, %271 : vector<2x14x14xf32>
    %c1_116 = arith.constant 1 : index
    %c11_117 = arith.constant 11 : index
    %273 = memref.load %arg3[%c1_116, %c11_117] : memref<4x16xf32, #tpu.memory_space<smem>>
    %274 = vector.broadcast %273 : f32 to vector<2x14x14xf32>
    %275 = arith.mulf %274, %244 : vector<2x14x14xf32>
    %276 = arith.addf %272, %275 : vector<2x14x14xf32>
    %c2_118 = arith.constant 2 : index
    %c8_119 = arith.constant 8 : index
    %277 = memref.load %arg3[%c2_118, %c8_119] : memref<4x16xf32, #tpu.memory_space<smem>>
    %278 = vector.broadcast %277 : f32 to vector<2x14x14xf32>
    %279 = arith.mulf %278, %241 : vector<2x14x14xf32>
    %280 = arith.addf %224, %279 : vector<2x14x14xf32>
    %c2_120 = arith.constant 2 : index
    %c9_121 = arith.constant 9 : index
    %281 = memref.load %arg3[%c2_120, %c9_121] : memref<4x16xf32, #tpu.memory_space<smem>>
    %282 = vector.broadcast %281 : f32 to vector<2x14x14xf32>
    %283 = arith.mulf %282, %242 : vector<2x14x14xf32>
    %284 = arith.addf %280, %283 : vector<2x14x14xf32>
    %c2_122 = arith.constant 2 : index
    %c10_123 = arith.constant 10 : index
    %285 = memref.load %arg3[%c2_122, %c10_123] : memref<4x16xf32, #tpu.memory_space<smem>>
    %286 = vector.broadcast %285 : f32 to vector<2x14x14xf32>
    %287 = arith.mulf %286, %243 : vector<2x14x14xf32>
    %288 = arith.addf %284, %287 : vector<2x14x14xf32>
    %c2_124 = arith.constant 2 : index
    %c11_125 = arith.constant 11 : index
    %289 = memref.load %arg3[%c2_124, %c11_125] : memref<4x16xf32, #tpu.memory_space<smem>>
    %290 = vector.broadcast %289 : f32 to vector<2x14x14xf32>
    %291 = arith.mulf %290, %244 : vector<2x14x14xf32>
    %292 = arith.addf %288, %291 : vector<2x14x14xf32>
    %c3_126 = arith.constant 3 : index
    %c8_127 = arith.constant 8 : index
    %293 = memref.load %arg3[%c3_126, %c8_127] : memref<4x16xf32, #tpu.memory_space<smem>>
    %294 = vector.broadcast %293 : f32 to vector<2x14x14xf32>
    %295 = arith.mulf %294, %241 : vector<2x14x14xf32>
    %296 = arith.addf %240, %295 : vector<2x14x14xf32>
    %c3_128 = arith.constant 3 : index
    %c9_129 = arith.constant 9 : index
    %297 = memref.load %arg3[%c3_128, %c9_129] : memref<4x16xf32, #tpu.memory_space<smem>>
    %298 = vector.broadcast %297 : f32 to vector<2x14x14xf32>
    %299 = arith.mulf %298, %242 : vector<2x14x14xf32>
    %300 = arith.addf %296, %299 : vector<2x14x14xf32>
    %c3_130 = arith.constant 3 : index
    %c10_131 = arith.constant 10 : index
    %301 = memref.load %arg3[%c3_130, %c10_131] : memref<4x16xf32, #tpu.memory_space<smem>>
    %302 = vector.broadcast %301 : f32 to vector<2x14x14xf32>
    %303 = arith.mulf %302, %243 : vector<2x14x14xf32>
    %304 = arith.addf %300, %303 : vector<2x14x14xf32>
    %c3_132 = arith.constant 3 : index
    %c11_133 = arith.constant 11 : index
    %305 = memref.load %arg3[%c3_132, %c11_133] : memref<4x16xf32, #tpu.memory_space<smem>>
    %306 = vector.broadcast %305 : f32 to vector<2x14x14xf32>
    %307 = arith.mulf %306, %244 : vector<2x14x14xf32>
    %308 = arith.addf %304, %307 : vector<2x14x14xf32>
    %309 = vector.extract_strided_slice %96 {offsets = [0, 0, 0], sizes = [2, 14, 14], strides = [1, 1, 1]} : vector<2x15x15xf32> to vector<2x14x14xf32>
    %310 = vector.extract_strided_slice %96 {offsets = [0, 0, 1], sizes = [2, 14, 14], strides = [1, 1, 1]} : vector<2x15x15xf32> to vector<2x14x14xf32>
    %311 = vector.extract_strided_slice %96 {offsets = [0, 1, 0], sizes = [2, 14, 14], strides = [1, 1, 1]} : vector<2x15x15xf32> to vector<2x14x14xf32>
    %312 = vector.extract_strided_slice %96 {offsets = [0, 1, 1], sizes = [2, 14, 14], strides = [1, 1, 1]} : vector<2x15x15xf32> to vector<2x14x14xf32>
    %c0_134 = arith.constant 0 : index
    %c12 = arith.constant 12 : index
    %313 = memref.load %arg3[%c0_134, %c12] : memref<4x16xf32, #tpu.memory_space<smem>>
    %314 = vector.broadcast %313 : f32 to vector<2x14x14xf32>
    %315 = arith.mulf %314, %309 : vector<2x14x14xf32>
    %316 = arith.addf %260, %315 : vector<2x14x14xf32>
    %c0_135 = arith.constant 0 : index
    %c13 = arith.constant 13 : index
    %317 = memref.load %arg3[%c0_135, %c13] : memref<4x16xf32, #tpu.memory_space<smem>>
    %318 = vector.broadcast %317 : f32 to vector<2x14x14xf32>
    %319 = arith.mulf %318, %310 : vector<2x14x14xf32>
    %320 = arith.addf %316, %319 : vector<2x14x14xf32>
    %c0_136 = arith.constant 0 : index
    %c14 = arith.constant 14 : index
    %321 = memref.load %arg3[%c0_136, %c14] : memref<4x16xf32, #tpu.memory_space<smem>>
    %322 = vector.broadcast %321 : f32 to vector<2x14x14xf32>
    %323 = arith.mulf %322, %311 : vector<2x14x14xf32>
    %324 = arith.addf %320, %323 : vector<2x14x14xf32>
    %c0_137 = arith.constant 0 : index
    %c15 = arith.constant 15 : index
    %325 = memref.load %arg3[%c0_137, %c15] : memref<4x16xf32, #tpu.memory_space<smem>>
    %326 = vector.broadcast %325 : f32 to vector<2x14x14xf32>
    %327 = arith.mulf %326, %312 : vector<2x14x14xf32>
    %328 = arith.addf %324, %327 : vector<2x14x14xf32>
    %c1_138 = arith.constant 1 : index
    %c12_139 = arith.constant 12 : index
    %329 = memref.load %arg3[%c1_138, %c12_139] : memref<4x16xf32, #tpu.memory_space<smem>>
    %330 = vector.broadcast %329 : f32 to vector<2x14x14xf32>
    %331 = arith.mulf %330, %309 : vector<2x14x14xf32>
    %332 = arith.addf %276, %331 : vector<2x14x14xf32>
    %c1_140 = arith.constant 1 : index
    %c13_141 = arith.constant 13 : index
    %333 = memref.load %arg3[%c1_140, %c13_141] : memref<4x16xf32, #tpu.memory_space<smem>>
    %334 = vector.broadcast %333 : f32 to vector<2x14x14xf32>
    %335 = arith.mulf %334, %310 : vector<2x14x14xf32>
    %336 = arith.addf %332, %335 : vector<2x14x14xf32>
    %c1_142 = arith.constant 1 : index
    %c14_143 = arith.constant 14 : index
    %337 = memref.load %arg3[%c1_142, %c14_143] : memref<4x16xf32, #tpu.memory_space<smem>>
    %338 = vector.broadcast %337 : f32 to vector<2x14x14xf32>
    %339 = arith.mulf %338, %311 : vector<2x14x14xf32>
    %340 = arith.addf %336, %339 : vector<2x14x14xf32>
    %c1_144 = arith.constant 1 : index
    %c15_145 = arith.constant 15 : index
    %341 = memref.load %arg3[%c1_144, %c15_145] : memref<4x16xf32, #tpu.memory_space<smem>>
    %342 = vector.broadcast %341 : f32 to vector<2x14x14xf32>
    %343 = arith.mulf %342, %312 : vector<2x14x14xf32>
    %344 = arith.addf %340, %343 : vector<2x14x14xf32>
    %c2_146 = arith.constant 2 : index
    %c12_147 = arith.constant 12 : index
    %345 = memref.load %arg3[%c2_146, %c12_147] : memref<4x16xf32, #tpu.memory_space<smem>>
    %346 = vector.broadcast %345 : f32 to vector<2x14x14xf32>
    %347 = arith.mulf %346, %309 : vector<2x14x14xf32>
    %348 = arith.addf %292, %347 : vector<2x14x14xf32>
    %c2_148 = arith.constant 2 : index
    %c13_149 = arith.constant 13 : index
    %349 = memref.load %arg3[%c2_148, %c13_149] : memref<4x16xf32, #tpu.memory_space<smem>>
    %350 = vector.broadcast %349 : f32 to vector<2x14x14xf32>
    %351 = arith.mulf %350, %310 : vector<2x14x14xf32>
    %352 = arith.addf %348, %351 : vector<2x14x14xf32>
    %c2_150 = arith.constant 2 : index
    %c14_151 = arith.constant 14 : index
    %353 = memref.load %arg3[%c2_150, %c14_151] : memref<4x16xf32, #tpu.memory_space<smem>>
    %354 = vector.broadcast %353 : f32 to vector<2x14x14xf32>
    %355 = arith.mulf %354, %311 : vector<2x14x14xf32>
    %356 = arith.addf %352, %355 : vector<2x14x14xf32>
    %c2_152 = arith.constant 2 : index
    %c15_153 = arith.constant 15 : index
    %357 = memref.load %arg3[%c2_152, %c15_153] : memref<4x16xf32, #tpu.memory_space<smem>>
    %358 = vector.broadcast %357 : f32 to vector<2x14x14xf32>
    %359 = arith.mulf %358, %312 : vector<2x14x14xf32>
    %360 = arith.addf %356, %359 : vector<2x14x14xf32>
    %c3_154 = arith.constant 3 : index
    %c12_155 = arith.constant 12 : index
    %361 = memref.load %arg3[%c3_154, %c12_155] : memref<4x16xf32, #tpu.memory_space<smem>>
    %362 = vector.broadcast %361 : f32 to vector<2x14x14xf32>
    %363 = arith.mulf %362, %309 : vector<2x14x14xf32>
    %364 = arith.addf %308, %363 : vector<2x14x14xf32>
    %c3_156 = arith.constant 3 : index
    %c13_157 = arith.constant 13 : index
    %365 = memref.load %arg3[%c3_156, %c13_157] : memref<4x16xf32, #tpu.memory_space<smem>>
    %366 = vector.broadcast %365 : f32 to vector<2x14x14xf32>
    %367 = arith.mulf %366, %310 : vector<2x14x14xf32>
    %368 = arith.addf %364, %367 : vector<2x14x14xf32>
    %c3_158 = arith.constant 3 : index
    %c14_159 = arith.constant 14 : index
    %369 = memref.load %arg3[%c3_158, %c14_159] : memref<4x16xf32, #tpu.memory_space<smem>>
    %370 = vector.broadcast %369 : f32 to vector<2x14x14xf32>
    %371 = arith.mulf %370, %311 : vector<2x14x14xf32>
    %372 = arith.addf %368, %371 : vector<2x14x14xf32>
    %c3_160 = arith.constant 3 : index
    %c15_161 = arith.constant 15 : index
    %373 = memref.load %arg3[%c3_160, %c15_161] : memref<4x16xf32, #tpu.memory_space<smem>>
    %374 = vector.broadcast %373 : f32 to vector<2x14x14xf32>
    %375 = arith.mulf %374, %312 : vector<2x14x14xf32>
    %376 = arith.addf %372, %375 : vector<2x14x14xf32>
    %cst_162 = arith.constant 0.000000e+00 : f32
    %377 = vector.broadcast %cst_162 : f32 to vector<2x14x14xf32>
    %378 = arith.cmpf oge, %328, %377 : vector<2x14x14xf32>
    %cst_163 = arith.constant 0.00999999977 : f32
    %379 = vector.broadcast %cst_163 : f32 to vector<2x14x14xf32>
    %380 = arith.mulf %379, %328 : vector<2x14x14xf32>
    %381 = arith.select %378, %328, %380 : vector<2x14x14xi1>, vector<2x14x14xf32>
    %cst_164 = arith.constant 0.000000e+00 : f32
    %382 = vector.broadcast %cst_164 : f32 to vector<2x14x14xf32>
    %383 = arith.cmpf oge, %344, %382 : vector<2x14x14xf32>
    %cst_165 = arith.constant 0.00999999977 : f32
    %384 = vector.broadcast %cst_165 : f32 to vector<2x14x14xf32>
    %385 = arith.mulf %384, %344 : vector<2x14x14xf32>
    %386 = arith.select %383, %344, %385 : vector<2x14x14xi1>, vector<2x14x14xf32>
    %cst_166 = arith.constant 0.000000e+00 : f32
    %387 = vector.broadcast %cst_166 : f32 to vector<2x14x14xf32>
    %388 = arith.cmpf oge, %360, %387 : vector<2x14x14xf32>
    %cst_167 = arith.constant 0.00999999977 : f32
    %389 = vector.broadcast %cst_167 : f32 to vector<2x14x14xf32>
    %390 = arith.mulf %389, %360 : vector<2x14x14xf32>
    %391 = arith.select %388, %360, %390 : vector<2x14x14xi1>, vector<2x14x14xf32>
    %cst_168 = arith.constant 0.000000e+00 : f32
    %392 = vector.broadcast %cst_168 : f32 to vector<2x14x14xf32>
    %393 = arith.cmpf oge, %376, %392 : vector<2x14x14xf32>
    %cst_169 = arith.constant 0.00999999977 : f32
    %394 = vector.broadcast %cst_169 : f32 to vector<2x14x14xf32>
    %395 = arith.mulf %394, %376 : vector<2x14x14xf32>
    %396 = arith.select %393, %376, %395 : vector<2x14x14xi1>, vector<2x14x14xf32>
    %c0_170 = arith.constant 0 : index
    %397 = memref.load %arg6[%c0_170] : memref<1xf32, #tpu.memory_space<smem>>
    %398 = vector.broadcast %397 : f32 to vector<2x13x13xf32>
    %c0_171 = arith.constant 0 : index
    %c0_172 = arith.constant 0 : index
    %399 = memref.load %arg5[%c0_171, %c0_172] : memref<1x16xf32, #tpu.memory_space<smem>>
    %400 = vector.extract_strided_slice %381 {offsets = [0, 0, 0], sizes = [2, 13, 13], strides = [1, 1, 1]} : vector<2x14x14xf32> to vector<2x13x13xf32>
    %401 = vector.broadcast %399 : f32 to vector<2x13x13xf32>
    %402 = arith.mulf %401, %400 : vector<2x13x13xf32>
    %403 = arith.addf %398, %402 : vector<2x13x13xf32>
    %c0_173 = arith.constant 0 : index
    %c1_174 = arith.constant 1 : index
    %404 = memref.load %arg5[%c0_173, %c1_174] : memref<1x16xf32, #tpu.memory_space<smem>>
    %405 = vector.extract_strided_slice %381 {offsets = [0, 0, 1], sizes = [2, 13, 13], strides = [1, 1, 1]} : vector<2x14x14xf32> to vector<2x13x13xf32>
    %406 = vector.broadcast %404 : f32 to vector<2x13x13xf32>
    %407 = arith.mulf %406, %405 : vector<2x13x13xf32>
    %408 = arith.addf %403, %407 : vector<2x13x13xf32>
    %c0_175 = arith.constant 0 : index
    %c2_176 = arith.constant 2 : index
    %409 = memref.load %arg5[%c0_175, %c2_176] : memref<1x16xf32, #tpu.memory_space<smem>>
    %410 = vector.extract_strided_slice %381 {offsets = [0, 1, 0], sizes = [2, 13, 13], strides = [1, 1, 1]} : vector<2x14x14xf32> to vector<2x13x13xf32>
    %411 = vector.broadcast %409 : f32 to vector<2x13x13xf32>
    %412 = arith.mulf %411, %410 : vector<2x13x13xf32>
    %413 = arith.addf %408, %412 : vector<2x13x13xf32>
    %c0_177 = arith.constant 0 : index
    %c3_178 = arith.constant 3 : index
    %414 = memref.load %arg5[%c0_177, %c3_178] : memref<1x16xf32, #tpu.memory_space<smem>>
    %415 = vector.extract_strided_slice %381 {offsets = [0, 1, 1], sizes = [2, 13, 13], strides = [1, 1, 1]} : vector<2x14x14xf32> to vector<2x13x13xf32>
    %416 = vector.broadcast %414 : f32 to vector<2x13x13xf32>
    %417 = arith.mulf %416, %415 : vector<2x13x13xf32>
    %418 = arith.addf %413, %417 : vector<2x13x13xf32>
    %c0_179 = arith.constant 0 : index
    %c4_180 = arith.constant 4 : index
    %419 = memref.load %arg5[%c0_179, %c4_180] : memref<1x16xf32, #tpu.memory_space<smem>>
    %420 = vector.extract_strided_slice %386 {offsets = [0, 0, 0], sizes = [2, 13, 13], strides = [1, 1, 1]} : vector<2x14x14xf32> to vector<2x13x13xf32>
    %421 = vector.broadcast %419 : f32 to vector<2x13x13xf32>
    %422 = arith.mulf %421, %420 : vector<2x13x13xf32>
    %423 = arith.addf %418, %422 : vector<2x13x13xf32>
    %c0_181 = arith.constant 0 : index
    %c5_182 = arith.constant 5 : index
    %424 = memref.load %arg5[%c0_181, %c5_182] : memref<1x16xf32, #tpu.memory_space<smem>>
    %425 = vector.extract_strided_slice %386 {offsets = [0, 0, 1], sizes = [2, 13, 13], strides = [1, 1, 1]} : vector<2x14x14xf32> to vector<2x13x13xf32>
    %426 = vector.broadcast %424 : f32 to vector<2x13x13xf32>
    %427 = arith.mulf %426, %425 : vector<2x13x13xf32>
    %428 = arith.addf %423, %427 : vector<2x13x13xf32>
    %c0_183 = arith.constant 0 : index
    %c6_184 = arith.constant 6 : index
    %429 = memref.load %arg5[%c0_183, %c6_184] : memref<1x16xf32, #tpu.memory_space<smem>>
    %430 = vector.extract_strided_slice %386 {offsets = [0, 1, 0], sizes = [2, 13, 13], strides = [1, 1, 1]} : vector<2x14x14xf32> to vector<2x13x13xf32>
    %431 = vector.broadcast %429 : f32 to vector<2x13x13xf32>
    %432 = arith.mulf %431, %430 : vector<2x13x13xf32>
    %433 = arith.addf %428, %432 : vector<2x13x13xf32>
    %c0_185 = arith.constant 0 : index
    %c7_186 = arith.constant 7 : index
    %434 = memref.load %arg5[%c0_185, %c7_186] : memref<1x16xf32, #tpu.memory_space<smem>>
    %435 = vector.extract_strided_slice %386 {offsets = [0, 1, 1], sizes = [2, 13, 13], strides = [1, 1, 1]} : vector<2x14x14xf32> to vector<2x13x13xf32>
    %436 = vector.broadcast %434 : f32 to vector<2x13x13xf32>
    %437 = arith.mulf %436, %435 : vector<2x13x13xf32>
    %438 = arith.addf %433, %437 : vector<2x13x13xf32>
    %c0_187 = arith.constant 0 : index
    %c8_188 = arith.constant 8 : index
    %439 = memref.load %arg5[%c0_187, %c8_188] : memref<1x16xf32, #tpu.memory_space<smem>>
    %440 = vector.extract_strided_slice %391 {offsets = [0, 0, 0], sizes = [2, 13, 13], strides = [1, 1, 1]} : vector<2x14x14xf32> to vector<2x13x13xf32>
    %441 = vector.broadcast %439 : f32 to vector<2x13x13xf32>
    %442 = arith.mulf %441, %440 : vector<2x13x13xf32>
    %443 = arith.addf %438, %442 : vector<2x13x13xf32>
    %c0_189 = arith.constant 0 : index
    %c9_190 = arith.constant 9 : index
    %444 = memref.load %arg5[%c0_189, %c9_190] : memref<1x16xf32, #tpu.memory_space<smem>>
    %445 = vector.extract_strided_slice %391 {offsets = [0, 0, 1], sizes = [2, 13, 13], strides = [1, 1, 1]} : vector<2x14x14xf32> to vector<2x13x13xf32>
    %446 = vector.broadcast %444 : f32 to vector<2x13x13xf32>
    %447 = arith.mulf %446, %445 : vector<2x13x13xf32>
    %448 = arith.addf %443, %447 : vector<2x13x13xf32>
    %c0_191 = arith.constant 0 : index
    %c10_192 = arith.constant 10 : index
    %449 = memref.load %arg5[%c0_191, %c10_192] : memref<1x16xf32, #tpu.memory_space<smem>>
    %450 = vector.extract_strided_slice %391 {offsets = [0, 1, 0], sizes = [2, 13, 13], strides = [1, 1, 1]} : vector<2x14x14xf32> to vector<2x13x13xf32>
    %451 = vector.broadcast %449 : f32 to vector<2x13x13xf32>
    %452 = arith.mulf %451, %450 : vector<2x13x13xf32>
    %453 = arith.addf %448, %452 : vector<2x13x13xf32>
    %c0_193 = arith.constant 0 : index
    %c11_194 = arith.constant 11 : index
    %454 = memref.load %arg5[%c0_193, %c11_194] : memref<1x16xf32, #tpu.memory_space<smem>>
    %455 = vector.extract_strided_slice %391 {offsets = [0, 1, 1], sizes = [2, 13, 13], strides = [1, 1, 1]} : vector<2x14x14xf32> to vector<2x13x13xf32>
    %456 = vector.broadcast %454 : f32 to vector<2x13x13xf32>
    %457 = arith.mulf %456, %455 : vector<2x13x13xf32>
    %458 = arith.addf %453, %457 : vector<2x13x13xf32>
    %c0_195 = arith.constant 0 : index
    %c12_196 = arith.constant 12 : index
    %459 = memref.load %arg5[%c0_195, %c12_196] : memref<1x16xf32, #tpu.memory_space<smem>>
    %460 = vector.extract_strided_slice %396 {offsets = [0, 0, 0], sizes = [2, 13, 13], strides = [1, 1, 1]} : vector<2x14x14xf32> to vector<2x13x13xf32>
    %461 = vector.broadcast %459 : f32 to vector<2x13x13xf32>
    %462 = arith.mulf %461, %460 : vector<2x13x13xf32>
    %463 = arith.addf %458, %462 : vector<2x13x13xf32>
    %c0_197 = arith.constant 0 : index
    %c13_198 = arith.constant 13 : index
    %464 = memref.load %arg5[%c0_197, %c13_198] : memref<1x16xf32, #tpu.memory_space<smem>>
    %465 = vector.extract_strided_slice %396 {offsets = [0, 0, 1], sizes = [2, 13, 13], strides = [1, 1, 1]} : vector<2x14x14xf32> to vector<2x13x13xf32>
    %466 = vector.broadcast %464 : f32 to vector<2x13x13xf32>
    %467 = arith.mulf %466, %465 : vector<2x13x13xf32>
    %468 = arith.addf %463, %467 : vector<2x13x13xf32>
    %c0_199 = arith.constant 0 : index
    %c14_200 = arith.constant 14 : index
    %469 = memref.load %arg5[%c0_199, %c14_200] : memref<1x16xf32, #tpu.memory_space<smem>>
    %470 = vector.extract_strided_slice %396 {offsets = [0, 1, 0], sizes = [2, 13, 13], strides = [1, 1, 1]} : vector<2x14x14xf32> to vector<2x13x13xf32>
    %471 = vector.broadcast %469 : f32 to vector<2x13x13xf32>
    %472 = arith.mulf %471, %470 : vector<2x13x13xf32>
    %473 = arith.addf %468, %472 : vector<2x13x13xf32>
    %c0_201 = arith.constant 0 : index
    %c15_202 = arith.constant 15 : index
    %474 = memref.load %arg5[%c0_201, %c15_202] : memref<1x16xf32, #tpu.memory_space<smem>>
    %475 = vector.extract_strided_slice %396 {offsets = [0, 1, 1], sizes = [2, 13, 13], strides = [1, 1, 1]} : vector<2x14x14xf32> to vector<2x13x13xf32>
    %476 = vector.broadcast %474 : f32 to vector<2x13x13xf32>
    %477 = arith.mulf %476, %475 : vector<2x13x13xf32>
    %478 = arith.addf %473, %477 : vector<2x13x13xf32>
    %cst_203 = arith.constant 0.000000e+00 : f32
    %479 = vector.broadcast %cst_203 : f32 to vector<2x13x13xf32>
    %480 = arith.cmpf oge, %478, %479 : vector<2x13x13xf32>
    %cst_204 = arith.constant 0.00999999977 : f32
    %481 = vector.broadcast %cst_204 : f32 to vector<2x13x13xf32>
    %482 = arith.mulf %481, %478 : vector<2x13x13xf32>
    %483 = arith.select %480, %478, %482 : vector<2x13x13xi1>, vector<2x13x13xf32>
    %484 = vector.extract_strided_slice %483 {offsets = [0, 0, 0], sizes = [2, 1, 13], strides = [1, 1, 1]} : vector<2x13x13xf32> to vector<2x1x13xf32>
    %485 = vector.shape_cast %484 : vector<2x1x13xf32> to vector<2x13xf32>
    %486 = vector.extract_strided_slice %483 {offsets = [0, 1, 0], sizes = [2, 1, 13], strides = [1, 1, 1]} : vector<2x13x13xf32> to vector<2x1x13xf32>
    %487 = vector.shape_cast %486 : vector<2x1x13xf32> to vector<2x13xf32>
    %488 = vector.extract_strided_slice %483 {offsets = [0, 2, 0], sizes = [2, 1, 13], strides = [1, 1, 1]} : vector<2x13x13xf32> to vector<2x1x13xf32>
    %489 = vector.shape_cast %488 : vector<2x1x13xf32> to vector<2x13xf32>
    %490 = vector.extract_strided_slice %483 {offsets = [0, 3, 0], sizes = [2, 1, 13], strides = [1, 1, 1]} : vector<2x13x13xf32> to vector<2x1x13xf32>
    %491 = vector.shape_cast %490 : vector<2x1x13xf32> to vector<2x13xf32>
    %492 = vector.extract_strided_slice %483 {offsets = [0, 4, 0], sizes = [2, 1, 13], strides = [1, 1, 1]} : vector<2x13x13xf32> to vector<2x1x13xf32>
    %493 = vector.shape_cast %492 : vector<2x1x13xf32> to vector<2x13xf32>
    %494 = vector.extract_strided_slice %483 {offsets = [0, 5, 0], sizes = [2, 1, 13], strides = [1, 1, 1]} : vector<2x13x13xf32> to vector<2x1x13xf32>
    %495 = vector.shape_cast %494 : vector<2x1x13xf32> to vector<2x13xf32>
    %496 = vector.extract_strided_slice %483 {offsets = [0, 6, 0], sizes = [2, 1, 13], strides = [1, 1, 1]} : vector<2x13x13xf32> to vector<2x1x13xf32>
    %497 = vector.shape_cast %496 : vector<2x1x13xf32> to vector<2x13xf32>
    %498 = vector.extract_strided_slice %483 {offsets = [0, 7, 0], sizes = [2, 1, 13], strides = [1, 1, 1]} : vector<2x13x13xf32> to vector<2x1x13xf32>
    %499 = vector.shape_cast %498 : vector<2x1x13xf32> to vector<2x13xf32>
    %500 = vector.extract_strided_slice %483 {offsets = [0, 8, 0], sizes = [2, 1, 13], strides = [1, 1, 1]} : vector<2x13x13xf32> to vector<2x1x13xf32>
    %501 = vector.shape_cast %500 : vector<2x1x13xf32> to vector<2x13xf32>
    %502 = vector.extract_strided_slice %483 {offsets = [0, 9, 0], sizes = [2, 1, 13], strides = [1, 1, 1]} : vector<2x13x13xf32> to vector<2x1x13xf32>
    %503 = vector.shape_cast %502 : vector<2x1x13xf32> to vector<2x13xf32>
    %504 = vector.extract_strided_slice %483 {offsets = [0, 10, 0], sizes = [2, 1, 13], strides = [1, 1, 1]} : vector<2x13x13xf32> to vector<2x1x13xf32>
    %505 = vector.shape_cast %504 : vector<2x1x13xf32> to vector<2x13xf32>
    %506 = vector.extract_strided_slice %483 {offsets = [0, 11, 0], sizes = [2, 1, 13], strides = [1, 1, 1]} : vector<2x13x13xf32> to vector<2x1x13xf32>
    %507 = vector.shape_cast %506 : vector<2x1x13xf32> to vector<2x13xf32>
    %508 = vector.extract_strided_slice %483 {offsets = [0, 12, 0], sizes = [2, 1, 13], strides = [1, 1, 1]} : vector<2x13x13xf32> to vector<2x1x13xf32>
    %509 = vector.shape_cast %508 : vector<2x1x13xf32> to vector<2x13xf32>
    %510 = tpu.concatenate %485, %487, %489, %491, %493, %495, %497, %499, %501, %503, %505, %507, %509 in 1 : vector<2x13xf32>, vector<2x13xf32>, vector<2x13xf32>, vector<2x13xf32>, vector<2x13xf32>, vector<2x13xf32>, vector<2x13xf32>, vector<2x13xf32>, vector<2x13xf32>, vector<2x13xf32>, vector<2x13xf32>, vector<2x13xf32>, vector<2x13xf32> -> vector<2x169xf32>
    %c0_205 = arith.constant 0 : index
    %c0_206 = arith.constant 0 : index
    %511 = vector.load %arg7[%c0_205, %c0_206] : memref<169x8xf32, #tpu.memory_space<vmem>>, vector<169x8xf32>
    %cst_207 = arith.constant dense<0.000000e+00> : vector<2x8xf32>
    %512 = tpu.matmul %510, %511, %cst_207 {dimension_numbers = #tpu.dot_dimension_numbers<[1], [0], [0], [1], [0, 0, 1, 1], [], []>} : vector<2x169xf32>, vector<169x8xf32>, vector<2x8xf32> -> vector<2x8xf32>
    %c0_208 = arith.constant 0 : index
    %c0_209 = arith.constant 0 : index
    %513 = vector.load %arg8[%c0_208, %c0_209] : memref<1x8xf32, #tpu.memory_space<vmem>>, vector<1x8xf32>
    %514 = vector.broadcast %513 : vector<1x8xf32> to vector<2x8xf32>
    %515 = arith.addf %512, %514 : vector<2x8xf32>
    %cst_210 = arith.constant 0.000000e+00 : f32
    %516 = vector.broadcast %cst_210 : f32 to vector<2x8xf32>
    %517 = arith.cmpf oge, %515, %516 : vector<2x8xf32>
    %cst_211 = arith.constant 0.00999999977 : f32
    %518 = vector.broadcast %cst_211 : f32 to vector<2x8xf32>
    %519 = arith.mulf %518, %515 : vector<2x8xf32>
    %520 = arith.select %517, %515, %519 : vector<2x8xi1>, vector<2x8xf32>
    %521 = vector.extract_strided_slice %520 {offsets = [0, 0], sizes = [2, 7], strides = [1, 1]} : vector<2x8xf32> to vector<2x7xf32>
    %cst_212 = arith.constant dense<0xFF800000> : vector<7xf32>
    %522 = vector.multi_reduction <maximumf>, %521, %cst_212 [0] : vector<2x7xf32> to vector<7xf32>
    %523 = vector.shape_cast %522 : vector<7xf32> to vector<1x7xf32>
    %524 = vector.broadcast %523 : vector<1x7xf32> to vector<2x7xf32>
    %525 = arith.subf %521, %524 : vector<2x7xf32>
    %526 = math.exp %525 : vector<2x7xf32>
    %cst_213 = arith.constant dense<0.000000e+00> : vector<7xf32>
    %527 = vector.multi_reduction <add>, %526, %cst_213 [0] : vector<2x7xf32> to vector<7xf32>
    %528 = vector.shape_cast %527 : vector<7xf32> to vector<1x7xf32>
    %529 = vector.broadcast %528 : vector<1x7xf32> to vector<2x7xf32>
    %530 = arith.divf %526, %529 : vector<2x7xf32>
    %c0_214 = arith.constant 0 : index
    %c0_215 = arith.constant 0 : index
    %531 = vector.load %arg9[%c0_214, %c0_215] : memref<2x8xf32, #tpu.memory_space<vmem>>, vector<2x7xf32>
    tpu.vector_store %arg9[%c0_214, %c0_215], %530 {strides = array<i32>} : memref<2x8xf32, #tpu.memory_space<vmem>>, vector<2x7xf32>,
    %532 = vector.extract_strided_slice %520 {offsets = [0, 7], sizes = [2, 1], strides = [1, 1]} : vector<2x8xf32> to vector<2x1xf32>
    %c0_216 = arith.constant 0 : index
    %c7_217 = arith.constant 7 : index
    %533 = vector.load %arg9[%c0_216, %c7_217] : memref<2x8xf32, #tpu.memory_space<vmem>>, vector<2x1xf32>
    tpu.vector_store %arg9[%c0_216, %c7_217], %532 {strides = array<i32>} : memref<2x8xf32, #tpu.memory_space<vmem>>, vector<2x1xf32>,
    return
  }
}

</mosaic_0001>

<llo_original>
// kernel: tpu_custom_call.1
$region0: #{tpu_custom_call.1}
  #allocation0 [shape = 'u32[]', space=smem, size = 0x4, offset = 0x4, fixed_abs, tag = 'smem constant byte address 0x4 - core index']
  #allocation1 [shape = 'u32[144,128]{1,0:T(1,128)}', space=vmem, size = 0x12000, scoped, tag = 'internal scratch']
  #allocation2 [shape = 'f32[1]{0:T(128)S(6)}', space=smem, size = 0x200, scoped, tag = 'scoped memory for tpu_custom_call.1']
  %s0 = inlined_call_operand.vmem [shape: f32[2,16,16], index: 0, kind: input, shape index: {}]
  %s1 = inlined_call_operand.vmem [shape: f32[4,4], index: 1, kind: input, shape index: {}]
  %s2 = inlined_call_operand.vmem [shape: f32[4], index: 2, kind: input, shape index: {}]
  %s3 = inlined_call_operand.vmem [shape: f32[4,16], index: 3, kind: input, shape index: {}]
  %s4 = inlined_call_operand.vmem [shape: f32[4], index: 4, kind: input, shape index: {}]
  %s5 = inlined_call_operand.vmem [shape: f32[1,16], index: 5, kind: input, shape index: {}]
  %s6 = inlined_call_operand.<no memory space> [shape: f32[1], index: 6, kind: input, shape index: {}]
  %s7 = inlined_call_operand.vmem [shape: f32[169,8], index: 7, kind: input, shape index: {}]
  %s8 = inlined_call_operand.vmem [shape: f32[1,8], index: 8, kind: input, shape index: {}]
  %s9 = inlined_call_operand.hbm [shape: f32[2,8], index: 9, kind: output, shape index: {}]
  %s10 = sld [smem:[#allocation0]]
  $region66: #{tpu_custom_call.1} parent=0
    _
  %s12 = ssub.s32 1, %s10
  %s13 = scalar_select 0, %s12, %s10
  %14 = sst [smem:[#allocation2]] %s6
  $region1: #{tpu_custom_call.1} parent=0
    #allocation3 [shape = 'u8[2048]{0}', space=smem, size = 0x800, scoped, tag = 'input window, operand 1, single buffered']
    #allocation4 [shape = 's32[1]{0}', space=sflag, size = 0x4, scoped, tag = 'scoped memory for tpu_custom_call.1']
    #allocation5 [shape = 's32[1]{0}', space=sflag, size = 0x4, scoped, tag = 'scoped memory for tpu_custom_call.1']
    #allocation6 [shape = 'u8[512]{0}', space=smem, size = 0x200, scoped, tag = 'input window, operand 2, single buffered']
    #allocation7 [shape = 's32[1]{0}', space=sflag, size = 0x4, scoped, tag = 'scoped memory for tpu_custom_call.1']
    #allocation8 [shape = 'u8[2048]{0}', space=smem, size = 0x800, scoped, tag = 'input window, operand 3, single buffered']
    #allocation9 [shape = 'u8[512]{0}', space=smem, size = 0x200, scoped, tag = 'input window, operand 4, single buffered']
    #allocation10 [shape = 's32[1]{0}', space=sflag, size = 0x4, scoped, tag = 'scoped memory for tpu_custom_call.1']
    #allocation11 [shape = 'u8[512]{0}', space=smem, size = 0x200, scoped, tag = 'input window, operand 5, single buffered']
    #allocation12 [shape = 'u8[1024]{0}', space=vmem, size = 0x400, scoped, tag = 'output window, operand 0, single buffered']
    %15 = vsyncpa [#allocation5], 0
    %16 = vsyncpa [#allocation7], 0
    %17 = vsyncpa [#allocation10], 0
    %18 = vsyncpa [#allocation4], 0
    // Predicated region
    $region2: #{tpu_custom_call.1} parent=1 // pred_check
      _
    $region3: #{tpu_custom_call.1} parent=1 // pred_check_branch
      %20 = sbr.rel (0) target = $region5
    $region4: #{tpu_custom_call.1} parent=1 // pred_region
      _
    $region5: #{tpu_custom_call.1} parent=1 // pred_fallthru
      _
    // Predicated region
    $region6: #{tpu_custom_call.1} parent=1 // pred_check
      _
    $region7: #{tpu_custom_call.1} parent=1 // pred_check_branch
      %22 = sbr.rel (0) target = $region9
    $region8: #{tpu_custom_call.1} parent=1 // pred_region
      %s24 = ssub.s32 64, 64
      %25 = vsyncadd [#allocation5], %s24
      %s27 = sshll.u32 %s1, 4
      %s28 = int_to_ptr.vmem [resolvable:$true] %s27
      %30 = dma.vmem_to_smem %s28, 64, [#allocation3], [#allocation5]
    $region9: #{tpu_custom_call.1} parent=1 // pred_fallthru
      _
    // Predicated region
    $region10: #{tpu_custom_call.1} parent=1 // pred_check
      _
    $region11: #{tpu_custom_call.1} parent=1 // pred_check_branch
      %32 = sbr.rel (0) target = $region13
    $region12: #{tpu_custom_call.1} parent=1 // pred_region
      %s34 = ssub.s32 16, 16
      %35 = vsyncadd [#allocation7], %s34
      %s37 = sshll.u32 %s2, 4
      %s38 = int_to_ptr.vmem [resolvable:$true] %s37
      %40 = dma.vmem_to_smem %s38, 16, [#allocation6], [#allocation7]
    $region13: #{tpu_custom_call.1} parent=1 // pred_fallthru
      _
    // Predicated region
    $region14: #{tpu_custom_call.1} parent=1 // pred_check
      _
    $region15: #{tpu_custom_call.1} parent=1 // pred_check_branch
      %42 = sbr.rel (0) target = $region17
    $region16: #{tpu_custom_call.1} parent=1 // pred_region
      %s44 = ssub.s32 64, 64
      %45 = vsyncadd [#allocation7], %s44
      %s47 = sshll.u32 %s3, 4
      %s48 = int_to_ptr.vmem [resolvable:$true] %s47
      %50 = dma.vmem_to_smem %s48, 64, [#allocation8], [#allocation7]
    $region17: #{tpu_custom_call.1} parent=1 // pred_fallthru
      _
    // Predicated region
    $region18: #{tpu_custom_call.1} parent=1 // pred_check
      _
    $region19: #{tpu_custom_call.1} parent=1 // pred_check_branch
      %52 = sbr.rel (0) target = $region21
    $region20: #{tpu_custom_call.1} parent=1 // pred_region
      %s54 = ssub.s32 16, 16
      %55 = vsyncadd [#allocation10], %s54
      %s57 = sshll.u32 %s4, 4
      %s58 = int_to_ptr.vmem [resolvable:$true] %s57
      %60 = dma.vmem_to_smem %s58, 16, [#allocation9], [#allocation10]
    $region21: #{tpu_custom_call.1} parent=1 // pred_fallthru
      _
    // Predicated region
    $region22: #{tpu_custom_call.1} parent=1 // pred_check
      _
    $region23: #{tpu_custom_call.1} parent=1 // pred_check_branch
      %62 = sbr.rel (0) target = $region25
    $region24: #{tpu_custom_call.1} parent=1 // pred_region
      %s64 = ssub.s32 16, 16
      %65 = vsyncadd [#allocation10], %s64
      %s67 = sshll.u32 %s5, 4
      %s68 = int_to_ptr.vmem [resolvable:$true] %s67
      %70 = dma.vmem_to_smem %s68, 16, [#allocation11], [#allocation10]
    $region25: #{tpu_custom_call.1} parent=1 // pred_fallthru
      _
    // Predicated region
    $region26: #{tpu_custom_call.1} parent=1 // pred_check
      _
    $region27: #{tpu_custom_call.1} parent=1 // pred_check_branch
      %72 = sbr.rel (0) target = $region29
    $region28: #{tpu_custom_call.1} parent=1 // pred_region
      _
    $region29: #{tpu_custom_call.1} parent=1 // pred_fallthru
      _
    // Predicated region
    $region30: #{tpu_custom_call.1} parent=1 // pred_check
      _
    $region31: #{tpu_custom_call.1} parent=1 // pred_check_branch
      %74 = sbr.rel (0) target = $region33
    $region32: #{tpu_custom_call.1} parent=1 // pred_region
      _
    $region33: #{tpu_custom_call.1} parent=1 // pred_fallthru
      _
    // Predicated region
    $region34: #{tpu_custom_call.1} parent=1 // pred_check
      _
    $region35: #{tpu_custom_call.1} parent=1 // pred_check_branch
      %76 = sbr.rel (0) target = $region37
    $region36: #{tpu_custom_call.1} parent=1 // pred_region
      _
    $region37: #{tpu_custom_call.1} parent=1 // pred_fallthru
      _
    // Predicated region
    $region38: #{tpu_custom_call.1} parent=1 // pred_check
      _
    $region39: #{tpu_custom_call.1} parent=1 // pred_check_branch
      %78 = sbr.rel (0) target = $region41
    $region40: #{tpu_custom_call.1} parent=1 // pred_region
      %79 = dma.done [#allocation5], 64
    $region41: #{tpu_custom_call.1} parent=1 // pred_fallthru
      _
    // Predicated region
    $region42: #{tpu_custom_call.1} parent=1 // pred_check
      _
    $region43: #{tpu_custom_call.1} parent=1 // pred_check_branch
      %81 = sbr.rel (0) target = $region45
    $region44: #{tpu_custom_call.1} parent=1 // pred_region
      %82 = dma.done [#allocation7], 16
    $region45: #{tpu_custom_call.1} parent=1 // pred_fallthru
      _
    // Predicated region
    $region46: #{tpu_custom_call.1} parent=1 // pred_check
      _
    $region47: #{tpu_custom_call.1} parent=1 // pred_check_branch
      %84 = sbr.rel (0) target = $region49
    $region48: #{tpu_custom_call.1} parent=1 // pred_region
      %85 = dma.done [#allocation7], 64
    $region49: #{tpu_custom_call.1} parent=1 // pred_fallthru
      _
    // Predicated region
    $region50: #{tpu_custom_call.1} parent=1 // pred_check
      _
    $region51: #{tpu_custom_call.1} parent=1 // pred_check_branch
      %87 = sbr.rel (0) target = $region53
    $region52: #{tpu_custom_call.1} parent=1 // pred_region
      %88 = dma.done [#allocation10], 16
    $region53: #{tpu_custom_call.1} parent=1 // pred_fallthru
      _
    // Predicated region
    $region54: #{tpu_custom_call.1} parent=1 // pred_check
      _
    $region55: #{tpu_custom_call.1} parent=1 // pred_check_branch
      %90 = sbr.rel (0) target = $region57
    $region56: #{tpu_custom_call.1} parent=1 // pred_region
      %91 = dma.done [#allocation10], 16
    $region57: #{tpu_custom_call.1} parent=1 // pred_fallthru
      _
    %92 = sfence
    %v93 = vld [vmem:[%s0] sm:$0xff]
    %v94 = vld [vmem:[%s0 + $0x8] sm:$0xff]
    %v95 = vld [vmem:[%s0 + $0x10] sm:$0xff]
    %v96 = vld [vmem:[%s0 + $0x18] sm:$0xff]
    %s97 = sld [smem:[#allocation6]]
    %v98 = vstv %s97
    %s99 = sld [smem:[#allocation3]]
    %v100 = vstv %s99
    %v101 = vmul.f32 %v100, %v93
    %v102 = vmul.f32 %v100, %v94
    %v103 = vmul.f32 %v100, %v95
    %v104 = vmul.f32 %v100, %v96
    %v105 = vadd.f32 %v98, %v101
    %v106 = vadd.f32 %v98, %v102
    %v107 = vadd.f32 %v98, %v103
    %v108 = vadd.f32 %v98, %v104
    %s109 = sld [smem:[#allocation3 + $0x1]]
    %v110 = vstv %s109
    %v111 = vmul.f32 %v110, %v93
    %v112 = vmul.f32 %v110, %v94
    %v113 = vmul.f32 %v110, %v95
    %v114 = vmul.f32 %v110, %v96
    %119 = vrot.lane.b32.xlu0 %v111, 127
    %v120 = vpop.permute.xlu0 %119
    %121 = vrot.lane.b32.xlu0 %v112, 127
    %v122 = vpop.permute.xlu0 %121
    %123 = vrot.lane.b32.xlu0 %v113, 127
    %v124 = vpop.permute.xlu0 %123
    %125 = vrot.lane.b32.xlu0 %v114, 127
    %v126 = vpop.permute.xlu0 %125
    %v131 = vadd.f32 %v105, %v120
    %v132 = vadd.f32 %v106, %v122
    %v133 = vadd.f32 %v107, %v124
    %v134 = vadd.f32 %v108, %v126
    %s135 = sld [smem:[#allocation3 + $0x2]]
    %v136 = vstv %s135
    %v137 = vmul.f32 %v136, %v93
    %v138 = vmul.f32 %v136, %v94
    %v139 = vmul.f32 %v136, %v95
    %v140 = vmul.f32 %v136, %v96
    %vm145 = vcmask 1046528
    %v146 = vrot.slane %v137, 1
    %v147 = vrot.slane %v138, 1
    %v148 = vsel %vm145, %v146, %v147
    %v149 = vrot.slane %v139, 1
    %v150 = vrot.slane %v140, 1
    %v151 = vsel %vm145, %v149, %v150
    %v156 = vadd.f32 %v131, %v148
    %v157 = vadd.f32 %v132, %v147
    %v158 = vadd.f32 %v133, %v151
    %v159 = vadd.f32 %v134, %v150
    %s160 = sld [smem:[#allocation3 + $0x3]]
    %v161 = vstv %s160
    %v162 = vmul.f32 %v161, %v93
    %v163 = vmul.f32 %v161, %v94
    %v164 = vmul.f32 %v161, %v95
    %v165 = vmul.f32 %v161, %v96
    %v170 = vrot.slane %v162, 1
    %v171 = vrot.slane %v163, 1
    %v172 = vsel %vm145, %v170, %v171
    %v173 = vrot.slane %v164, 1
    %v174 = vrot.slane %v165, 1
    %v175 = vsel %vm145, %v173, %v174
    %176 = vrot.lane.b32.xlu0 %v172, 127
    %v177 = vpop.permute.xlu0 %176
    %178 = vrot.lane.b32.xlu0 %v171, 127
    %v179 = vpop.permute.xlu0 %178
    %180 = vrot.lane.b32.xlu0 %v175, 127
    %v181 = vpop.permute.xlu0 %180
    %182 = vrot.lane.b32.xlu0 %v174, 127
    %v183 = vpop.permute.xlu0 %182
    %v188 = vadd.f32 %v156, %v177
    %v189 = vadd.f32 %v157, %v179
    %v190 = vadd.f32 %v158, %v181
    %v191 = vadd.f32 %v159, %v183
    %vm192 = vcmp.ge.f32.partialorder %v188, 0.0
    %vm193 = vcmp.ge.f32.partialorder %v189, 0.0
    %vm194 = vcmp.ge.f32.partialorder %v190, 0.0
    %vm195 = vcmp.ge.f32.partialorder %v191, 0.0
    %v196 = vmul.f32 %v188, 0.01
    %v197 = vmul.f32 %v189, 0.01
    %v198 = vmul.f32 %v190, 0.01
    %v199 = vmul.f32 %v191, 0.01
    %v200 = vsel %vm192, %v188, %v196
    %v201 = vsel %vm193, %v189, %v197
    %v202 = vsel %vm194, %v190, %v198
    %v203 = vsel %vm195, %v191, %v199
    %s204 = sld [smem:[#allocation6 + $0x1]]
    %v205 = vstv %s204
    %s206 = sld [smem:[#allocation3 + $0x80]]
    %v207 = vstv %s206
    %v208 = vmul.f32 %v207, %v93
    %v209 = vmul.f32 %v207, %v94
    %v210 = vmul.f32 %v207, %v95
    %v211 = vmul.f32 %v207, %v96
    %v212 = vadd.f32 %v205, %v208
    %v213 = vadd.f32 %v205, %v209
    %v214 = vadd.f32 %v205, %v210
    %v215 = vadd.f32 %v205, %v211
    %s216 = sld [smem:[#allocation3 + $0x81]]
    %v217 = vstv %s216
    %v218 = vmul.f32 %v217, %v93
    %v219 = vmul.f32 %v217, %v94
    %v220 = vmul.f32 %v217, %v95
    %v221 = vmul.f32 %v217, %v96
    %226 = vrot.lane.b32.xlu0 %v218, 127
    %v227 = vpop.permute.xlu0 %226
    %228 = vrot.lane.b32.xlu0 %v219, 127
    %v229 = vpop.permute.xlu0 %228
    %230 = vrot.lane.b32.xlu0 %v220, 127
    %v231 = vpop.permute.xlu0 %230
    %232 = vrot.lane.b32.xlu0 %v221, 127
    %v233 = vpop.permute.xlu0 %232
    %v238 = vadd.f32 %v212, %v227
    %v239 = vadd.f32 %v213, %v229
    %v240 = vadd.f32 %v214, %v231
    %v241 = vadd.f32 %v215, %v233
    %s242 = sld [smem:[#allocation3 + $0x82]]
    %v243 = vstv %s242
    %v244 = vmul.f32 %v243, %v93
    %v245 = vmul.f32 %v243, %v94
    %v246 = vmul.f32 %v243, %v95
    %v247 = vmul.f32 %v243, %v96
    %v252 = vrot.slane %v244, 1
    %v253 = vrot.slane %v245, 1
    %v254 = vsel %vm145, %v252, %v253
    %v255 = vrot.slane %v246, 1
    %v256 = vrot.slane %v247, 1
    %v257 = vsel %vm145, %v255, %v256
    %v262 = vadd.f32 %v238, %v254
    %v263 = vadd.f32 %v239, %v253
    %v264 = vadd.f32 %v240, %v257
    %v265 = vadd.f32 %v241, %v256
    %s266 = sld [smem:[#allocation3 + $0x83]]
    %v267 = vstv %s266
    %v268 = vmul.f32 %v267, %v93
    %v269 = vmul.f32 %v267, %v94
    %v270 = vmul.f32 %v267, %v95
    %v271 = vmul.f32 %v267, %v96
    %v276 = vrot.slane %v268, 1
    %v277 = vrot.slane %v269, 1
    %v278 = vsel %vm145, %v276, %v277
    %v279 = vrot.slane %v270, 1
    %v280 = vrot.slane %v271, 1
    %v281 = vsel %vm145, %v279, %v280
    %282 = vrot.lane.b32.xlu0 %v278, 127
    %v283 = vpop.permute.xlu0 %282
    %284 = vrot.lane.b32.xlu0 %v277, 127
    %v285 = vpop.permute.xlu0 %284
    %286 = vrot.lane.b32.xlu0 %v281, 127
    %v287 = vpop.permute.xlu0 %286
    %288 = vrot.lane.b32.xlu0 %v280, 127
    %v289 = vpop.permute.xlu0 %288
    %v294 = vadd.f32 %v262, %v283
    %v295 = vadd.f32 %v263, %v285
    %v296 = vadd.f32 %v264, %v287
    %v297 = vadd.f32 %v265, %v289
    %vm298 = vcmp.ge.f32.partialorder %v294, 0.0
    %vm299 = vcmp.ge.f32.partialorder %v295, 0.0
    %vm300 = vcmp.ge.f32.partialorder %v296, 0.0
    %vm301 = vcmp.ge.f32.partialorder %v297, 0.0
    %v302 = vmul.f32 %v294, 0.01
    %v303 = vmul.f32 %v295, 0.01
    %v304 = vmul.f32 %v296, 0.01
    %v305 = vmul.f32 %v297, 0.01
    %v306 = vsel %vm298, %v294, %v302
    %v307 = vsel %vm299, %v295, %v303
    %v308 = vsel %vm300, %v296, %v304
    %v309 = vsel %vm301, %v297, %v305
    %s310 = sld [smem:[#allocation6 + $0x2]]
    %v311 = vstv %s310
    %s312 = sld [smem:[#allocation3 + $0x100]]
    %v313 = vstv %s312
    %v314 = vmul.f32 %v313, %v93
    %v315 = vmul.f32 %v313, %v94
    %v316 = vmul.f32 %v313, %v95
    %v317 = vmul.f32 %v313, %v96
    %v318 = vadd.f32 %v311, %v314
    %v319 = vadd.f32 %v311, %v315
    %v320 = vadd.f32 %v311, %v316
    %v321 = vadd.f32 %v311, %v317
    %s322 = sld [smem:[#allocation3 + $0x101]]
    %v323 = vstv %s322
    %v324 = vmul.f32 %v323, %v93
    %v325 = vmul.f32 %v323, %v94
    %v326 = vmul.f32 %v323, %v95
    %v327 = vmul.f32 %v323, %v96
    %332 = vrot.lane.b32.xlu0 %v324, 127
    %v333 = vpop.permute.xlu0 %332
    %334 = vrot.lane.b32.xlu0 %v325, 127
    %v335 = vpop.permute.xlu0 %334
    %336 = vrot.lane.b32.xlu0 %v326, 127
    %v337 = vpop.permute.xlu0 %336
    %338 = vrot.lane.b32.xlu0 %v327, 127
    %v339 = vpop.permute.xlu0 %338
    %v344 = vadd.f32 %v318, %v333
    %v345 = vadd.f32 %v319, %v335
    %v346 = vadd.f32 %v320, %v337
    %v347 = vadd.f32 %v321, %v339
    %s348 = sld [smem:[#allocation3 + $0x102]]
    %v349 = vstv %s348
    %v350 = vmul.f32 %v349, %v93
    %v351 = vmul.f32 %v349, %v94
    %v352 = vmul.f32 %v349, %v95
    %v353 = vmul.f32 %v349, %v96
    %v358 = vrot.slane %v350, 1
    %v359 = vrot.slane %v351, 1
    %v360 = vsel %vm145, %v358, %v359
    %v361 = vrot.slane %v352, 1
    %v362 = vrot.slane %v353, 1
    %v363 = vsel %vm145, %v361, %v362
    %v368 = vadd.f32 %v344, %v360
    %v369 = vadd.f32 %v345, %v359
    %v370 = vadd.f32 %v346, %v363
    %v371 = vadd.f32 %v347, %v362
    %s372 = sld [smem:[#allocation3 + $0x103]]
    %v373 = vstv %s372
    %v374 = vmul.f32 %v373, %v93
    %v375 = vmul.f32 %v373, %v94
    %v376 = vmul.f32 %v373, %v95
    %v377 = vmul.f32 %v373, %v96
    %v382 = vrot.slane %v374, 1
    %v383 = vrot.slane %v375, 1
    %v384 = vsel %vm145, %v382, %v383
    %v385 = vrot.slane %v376, 1
    %v386 = vrot.slane %v377, 1
    %v387 = vsel %vm145, %v385, %v386
    %388 = vrot.lane.b32.xlu0 %v384, 127
    %v389 = vpop.permute.xlu0 %388
    %390 = vrot.lane.b32.xlu0 %v383, 127
    %v391 = vpop.permute.xlu0 %390
    %392 = vrot.lane.b32.xlu0 %v387, 127
    %v393 = vpop.permute.xlu0 %392
    %394 = vrot.lane.b32.xlu0 %v386, 127
    %v395 = vpop.permute.xlu0 %394
    %v400 = vadd.f32 %v368, %v389
    %v401 = vadd.f32 %v369, %v391
    %v402 = vadd.f32 %v370, %v393
    %v403 = vadd.f32 %v371, %v395
    %vm404 = vcmp.ge.f32.partialorder %v400, 0.0
    %vm405 = vcmp.ge.f32.partialorder %v401, 0.0
    %vm406 = vcmp.ge.f32.partialorder %v402, 0.0
    %vm407 = vcmp.ge.f32.partialorder %v403, 0.0
    %v408 = vmul.f32 %v400, 0.01
    %v409 = vmul.f32 %v401, 0.01
    %v410 = vmul.f32 %v402, 0.01
    %v411 = vmul.f32 %v403, 0.01
    %v412 = vsel %vm404, %v400, %v408
    %v413 = vsel %vm405, %v401, %v409
    %v414 = vsel %vm406, %v402, %v410
    %v415 = vsel %vm407, %v403, %v411
    %s416 = sld [smem:[#allocation6 + $0x3]]
    %v417 = vstv %s416
    %s418 = sld [smem:[#allocation3 + $0x180]]
    %v419 = vstv %s418
    %v420 = vmul.f32 %v419, %v93
    %v421 = vmul.f32 %v419, %v94
    %v422 = vmul.f32 %v419, %v95
    %v423 = vmul.f32 %v419, %v96
    %v424 = vadd.f32 %v417, %v420
    %v425 = vadd.f32 %v417, %v421
    %v426 = vadd.f32 %v417, %v422
    %v427 = vadd.f32 %v417, %v423
    %s428 = sld [smem:[#allocation3 + $0x181]]
    %v429 = vstv %s428
    %v430 = vmul.f32 %v429, %v93
    %v431 = vmul.f32 %v429, %v94
    %v432 = vmul.f32 %v429, %v95
    %v433 = vmul.f32 %v429, %v96
    %438 = vrot.lane.b32.xlu0 %v430, 127
    %v439 = vpop.permute.xlu0 %438
    %440 = vrot.lane.b32.xlu0 %v431, 127
    %v441 = vpop.permute.xlu0 %440
    %442 = vrot.lane.b32.xlu0 %v432, 127
    %v443 = vpop.permute.xlu0 %442
    %444 = vrot.lane.b32.xlu0 %v433, 127
    %v445 = vpop.permute.xlu0 %444
    %v450 = vadd.f32 %v424, %v439
    %v451 = vadd.f32 %v425, %v441
    %v452 = vadd.f32 %v426, %v443
    %v453 = vadd.f32 %v427, %v445
    %s454 = sld [smem:[#allocation3 + $0x182]]
    %v455 = vstv %s454
    %v456 = vmul.f32 %v455, %v93
    %v457 = vmul.f32 %v455, %v94
    %v458 = vmul.f32 %v455, %v95
    %v459 = vmul.f32 %v455, %v96
    %v464 = vrot.slane %v456, 1
    %v465 = vrot.slane %v457, 1
    %v466 = vsel %vm145, %v464, %v465
    %v467 = vrot.slane %v458, 1
    %v468 = vrot.slane %v459, 1
    %v469 = vsel %vm145, %v467, %v468
    %v474 = vadd.f32 %v450, %v466
    %v475 = vadd.f32 %v451, %v465
    %v476 = vadd.f32 %v452, %v469
    %v477 = vadd.f32 %v453, %v468
    %s478 = sld [smem:[#allocation3 + $0x183]]
    %v479 = vstv %s478
    %v480 = vmul.f32 %v479, %v93
    %v481 = vmul.f32 %v479, %v94
    %v482 = vmul.f32 %v479, %v95
    %v483 = vmul.f32 %v479, %v96
    %v488 = vrot.slane %v480, 1
    %v489 = vrot.slane %v481, 1
    %v490 = vsel %vm145, %v488, %v489
    %v491 = vrot.slane %v482, 1
    %v492 = vrot.slane %v483, 1
    %v493 = vsel %vm145, %v491, %v492
    %494 = vrot.lane.b32.xlu0 %v490, 127
    %v495 = vpop.permute.xlu0 %494
    %496 = vrot.lane.b32.xlu0 %v489, 127
    %v497 = vpop.permute.xlu0 %496
    %498 = vrot.lane.b32.xlu0 %v493, 127
    %v499 = vpop.permute.xlu0 %498
    %500 = vrot.lane.b32.xlu0 %v492, 127
    %v501 = vpop.permute.xlu0 %500
    %v506 = vadd.f32 %v474, %v495
    %v507 = vadd.f32 %v475, %v497
    %v508 = vadd.f32 %v476, %v499
    %v509 = vadd.f32 %v477, %v501
    %vm510 = vcmp.ge.f32.partialorder %v506, 0.0
    %vm511 = vcmp.ge.f32.partialorder %v507, 0.0
    %vm512 = vcmp.ge.f32.partialorder %v508, 0.0
    %vm513 = vcmp.ge.f32.partialorder %v509, 0.0
    %v514 = vmul.f32 %v506, 0.01
    %v515 = vmul.f32 %v507, 0.01
    %v516 = vmul.f32 %v508, 0.01
    %v517 = vmul.f32 %v509, 0.01
    %v518 = vsel %vm510, %v506, %v514
    %v519 = vsel %vm511, %v507, %v515
    %v520 = vsel %vm512, %v508, %v516
    %v521 = vsel %vm513, %v509, %v517
    %s522 = sld [smem:[#allocation9]]
    %v523 = vstv %s522
    %s524 = sld [smem:[#allocation9 + $0x1]]
    %v525 = vstv %s524
    %s526 = sld [smem:[#allocation9 + $0x2]]
    %v527 = vstv %s526
    %s528 = sld [smem:[#allocation9 + $0x3]]
    %v529 = vstv %s528
    %s530 = sld [smem:[#allocation8]]
    %v531 = vstv %s530
    %v532 = vmul.f32 %v531, %v200
    %v533 = vmul.f32 %v531, %v201
    %v534 = vmul.f32 %v531, %v202
    %v535 = vmul.f32 %v531, %v203
    %v536 = vadd.f32 %v523, %v532
    %v537 = vadd.f32 %v523, %v533
    %v538 = vadd.f32 %v523, %v534
    %v539 = vadd.f32 %v523, %v535
    %s540 = sld [smem:[#allocation8 + $0x1]]
    %v541 = vstv %s540
    %v542 = vmul.f32 %v541, %v200
    %v543 = vmul.f32 %v541, %v201
    %v544 = vmul.f32 %v541, %v202
    %v545 = vmul.f32 %v541, %v203
    %550 = vrot.lane.b32.xlu0 %v542, 127
    %v551 = vpop.permute.xlu0 %550
    %552 = vrot.lane.b32.xlu0 %v543, 127
    %v553 = vpop.permute.xlu0 %552
    %554 = vrot.lane.b32.xlu0 %v544, 127
    %v555 = vpop.permute.xlu0 %554
    %556 = vrot.lane.b32.xlu0 %v545, 127
    %v557 = vpop.permute.xlu0 %556
    %v562 = vadd.f32 %v536, %v551
    %v563 = vadd.f32 %v537, %v553
    %v564 = vadd.f32 %v538, %v555
    %v565 = vadd.f32 %v539, %v557
    %s566 = sld [smem:[#allocation8 + $0x2]]
    %v567 = vstv %s566
    %v568 = vmul.f32 %v567, %v200
    %v569 = vmul.f32 %v567, %v201
    %v570 = vmul.f32 %v567, %v202
    %v571 = vmul.f32 %v567, %v203
    %v576 = vrot.slane %v568, 1
    %v577 = vrot.slane %v569, 1
    %v578 = vsel %vm145, %v576, %v577
    %v579 = vrot.slane %v570, 1
    %v580 = vrot.slane %v571, 1
    %v581 = vsel %vm145, %v579, %v580
    %v586 = vadd.f32 %v562, %v578
    %v587 = vadd.f32 %v563, %v577
    %v588 = vadd.f32 %v564, %v581
    %v589 = vadd.f32 %v565, %v580
    %s590 = sld [smem:[#allocation8 + $0x3]]
    %v591 = vstv %s590
    %v592 = vmul.f32 %v591, %v200
    %v593 = vmul.f32 %v591, %v201
    %v594 = vmul.f32 %v591, %v202
    %v595 = vmul.f32 %v591, %v203
    %v600 = vrot.slane %v592, 1
    %v601 = vrot.slane %v593, 1
    %v602 = vsel %vm145, %v600, %v601
    %v603 = vrot.slane %v594, 1
    %v604 = vrot.slane %v595, 1
    %v605 = vsel %vm145, %v603, %v604
    %606 = vrot.lane.b32.xlu0 %v602, 127
    %v607 = vpop.permute.xlu0 %606
    %608 = vrot.lane.b32.xlu0 %v601, 127
    %v609 = vpop.permute.xlu0 %608
    %610 = vrot.lane.b32.xlu0 %v605, 127
    %v611 = vpop.permute.xlu0 %610
    %612 = vrot.lane.b32.xlu0 %v604, 127
    %v613 = vpop.permute.xlu0 %612
    %v618 = vadd.f32 %v586, %v607
    %v619 = vadd.f32 %v587, %v609
    %v620 = vadd.f32 %v588, %v611
    %v621 = vadd.f32 %v589, %v613
    %s622 = sld [smem:[#allocation8 + $0x80]]
    %v623 = vstv %s622
    %v624 = vmul.f32 %v623, %v200
    %v625 = vmul.f32 %v623, %v201
    %v626 = vmul.f32 %v623, %v202
    %v627 = vmul.f32 %v623, %v203
    %v628 = vadd.f32 %v525, %v624
    %v629 = vadd.f32 %v525, %v625
    %v630 = vadd.f32 %v525, %v626
    %v631 = vadd.f32 %v525, %v627
    %s632 = sld [smem:[#allocation8 + $0x81]]
    %v633 = vstv %s632
    %v634 = vmul.f32 %v633, %v200
    %v635 = vmul.f32 %v633, %v201
    %v636 = vmul.f32 %v633, %v202
    %v637 = vmul.f32 %v633, %v203
    %642 = vrot.lane.b32.xlu0 %v634, 127
    %v643 = vpop.permute.xlu0 %642
    %644 = vrot.lane.b32.xlu0 %v635, 127
    %v645 = vpop.permute.xlu0 %644
    %646 = vrot.lane.b32.xlu0 %v636, 127
    %v647 = vpop.permute.xlu0 %646
    %648 = vrot.lane.b32.xlu0 %v637, 127
    %v649 = vpop.permute.xlu0 %648
    %v654 = vadd.f32 %v628, %v643
    %v655 = vadd.f32 %v629, %v645
    %v656 = vadd.f32 %v630, %v647
    %v657 = vadd.f32 %v631, %v649
    %s658 = sld [smem:[#allocation8 + $0x82]]
    %v659 = vstv %s658
    %v660 = vmul.f32 %v659, %v200
    %v661 = vmul.f32 %v659, %v201
    %v662 = vmul.f32 %v659, %v202
    %v663 = vmul.f32 %v659, %v203
    %v668 = vrot.slane %v660, 1
    %v669 = vrot.slane %v661, 1
    %v670 = vsel %vm145, %v668, %v669
    %v671 = vrot.slane %v662, 1
    %v672 = vrot.slane %v663, 1
    %v673 = vsel %vm145, %v671, %v672
    %v678 = vadd.f32 %v654, %v670
    %v679 = vadd.f32 %v655, %v669
    %v680 = vadd.f32 %v656, %v673
    %v681 = vadd.f32 %v657, %v672
    %s682 = sld [smem:[#allocation8 + $0x83]]
    %v683 = vstv %s682
    %v684 = vmul.f32 %v683, %v200
    %v685 = vmul.f32 %v683, %v201
    %v686 = vmul.f32 %v683, %v202
    %v687 = vmul.f32 %v683, %v203
    %v692 = vrot.slane %v684, 1
    %v693 = vrot.slane %v685, 1
    %v694 = vsel %vm145, %v692, %v693
    %v695 = vrot.slane %v686, 1
    %v696 = vrot.slane %v687, 1
    %v697 = vsel %vm145, %v695, %v696
    %698 = vrot.lane.b32.xlu0 %v694, 127
    %v699 = vpop.permute.xlu0 %698
    %700 = vrot.lane.b32.xlu0 %v693, 127
    %v701 = vpop.permute.xlu0 %700
    %702 = vrot.lane.b32.xlu0 %v697, 127
    %v703 = vpop.permute.xlu0 %702
    %704 = vrot.lane.b32.xlu0 %v696, 127
    %v705 = vpop.permute.xlu0 %704
    %v710 = vadd.f32 %v678, %v699
    %v711 = vadd.f32 %v679, %v701
    %v712 = vadd.f32 %v680, %v703
    %v713 = vadd.f32 %v681, %v705
    %s714 = sld [smem:[#allocation8 + $0x100]]
    %v715 = vstv %s714
    %v716 = vmul.f32 %v715, %v200
    %v717 = vmul.f32 %v715, %v201
    %v718 = vmul.f32 %v715, %v202
    %v719 = vmul.f32 %v715, %v203
    %v720 = vadd.f32 %v527, %v716
    %v721 = vadd.f32 %v527, %v717
    %v722 = vadd.f32 %v527, %v718
    %v723 = vadd.f32 %v527, %v719
    %s724 = sld [smem:[#allocation8 + $0x101]]
    %v725 = vstv %s724
    %v726 = vmul.f32 %v725, %v200
    %v727 = vmul.f32 %v725, %v201
    %v728 = vmul.f32 %v725, %v202
    %v729 = vmul.f32 %v725, %v203
    %734 = vrot.lane.b32.xlu0 %v726, 127
    %v735 = vpop.permute.xlu0 %734
    %736 = vrot.lane.b32.xlu0 %v727, 127
    %v737 = vpop.permute.xlu0 %736
    %738 = vrot.lane.b32.xlu0 %v728, 127
    %v739 = vpop.permute.xlu0 %738
    %740 = vrot.lane.b32.xlu0 %v729, 127
    %v741 = vpop.permute.xlu0 %740
    %v746 = vadd.f32 %v720, %v735
    %v747 = vadd.f32 %v721, %v737
    %v748 = vadd.f32 %v722, %v739
    %v749 = vadd.f32 %v723, %v741
    %s750 = sld [smem:[#allocation8 + $0x102]]
    %v751 = vstv %s750
    %v752 = vmul.f32 %v751, %v200
    %v753 = vmul.f32 %v751, %v201
    %v754 = vmul.f32 %v751, %v202
    %v755 = vmul.f32 %v751, %v203
    %v760 = vrot.slane %v752, 1
    %v761 = vrot.slane %v753, 1
    %v762 = vsel %vm145, %v760, %v761
    %v763 = vrot.slane %v754, 1
    %v764 = vrot.slane %v755, 1
    %v765 = vsel %vm145, %v763, %v764
    %v770 = vadd.f32 %v746, %v762
    %v771 = vadd.f32 %v747, %v761
    %v772 = vadd.f32 %v748, %v765
    %v773 = vadd.f32 %v749, %v764
    %s774 = sld [smem:[#allocation8 + $0x103]]
    %v775 = vstv %s774
    %v776 = vmul.f32 %v775, %v200
    %v777 = vmul.f32 %v775, %v201
    %v778 = vmul.f32 %v775, %v202
    %v779 = vmul.f32 %v775, %v203
    %v784 = vrot.slane %v776, 1
    %v785 = vrot.slane %v777, 1
    %v786 = vsel %vm145, %v784, %v785
    %v787 = vrot.slane %v778, 1
    %v788 = vrot.slane %v779, 1
    %v789 = vsel %vm145, %v787, %v788
    %790 = vrot.lane.b32.xlu0 %v786, 127
    %v791 = vpop.permute.xlu0 %790
    %792 = vrot.lane.b32.xlu0 %v785, 127
    %v793 = vpop.permute.xlu0 %792
    %794 = vrot.lane.b32.xlu0 %v789, 127
    %v795 = vpop.permute.xlu0 %794
    %796 = vrot.lane.b32.xlu0 %v788, 127
    %v797 = vpop.permute.xlu0 %796
    %v802 = vadd.f32 %v770, %v791
    %v803 = vadd.f32 %v771, %v793
    %v804 = vadd.f32 %v772, %v795
    %v805 = vadd.f32 %v773, %v797
    %s806 = sld [smem:[#allocation8 + $0x180]]
    %v807 = vstv %s806
    %v808 = vmul.f32 %v807, %v200
    %v809 = vmul.f32 %v807, %v201
    %v810 = vmul.f32 %v807, %v202
    %v811 = vmul.f32 %v807, %v203
    %v812 = vadd.f32 %v529, %v808
    %v813 = vadd.f32 %v529, %v809
    %v814 = vadd.f32 %v529, %v810
    %v815 = vadd.f32 %v529, %v811
    %s816 = sld [smem:[#allocation8 + $0x181]]
    %v817 = vstv %s816
    %v818 = vmul.f32 %v817, %v200
    %v819 = vmul.f32 %v817, %v201
    %v820 = vmul.f32 %v817, %v202
    %v821 = vmul.f32 %v817, %v203
    %826 = vrot.lane.b32.xlu0 %v818, 127
    %v827 = vpop.permute.xlu0 %826
    %828 = vrot.lane.b32.xlu0 %v819, 127
    %v829 = vpop.permute.xlu0 %828
    %830 = vrot.lane.b32.xlu0 %v820, 127
    %v831 = vpop.permute.xlu0 %830
    %832 = vrot.lane.b32.xlu0 %v821, 127
    %v833 = vpop.permute.xlu0 %832
    %v838 = vadd.f32 %v812, %v827
    %v839 = vadd.f32 %v813, %v829
    %v840 = vadd.f32 %v814, %v831
    %v841 = vadd.f32 %v815, %v833
    %s842 = sld [smem:[#allocation8 + $0x182]]
    %v843 = vstv %s842
    %v844 = vmul.f32 %v843, %v200
    %v845 = vmul.f32 %v843, %v201
    %v846 = vmul.f32 %v843, %v202
    %v847 = vmul.f32 %v843, %v203
    %v852 = vrot.slane %v844, 1
    %v853 = vrot.slane %v845, 1
    %v854 = vsel %vm145, %v852, %v853
    %v855 = vrot.slane %v846, 1
    %v856 = vrot.slane %v847, 1
    %v857 = vsel %vm145, %v855, %v856
    %v862 = vadd.f32 %v838, %v854
    %v863 = vadd.f32 %v839, %v853
    %v864 = vadd.f32 %v840, %v857
    %v865 = vadd.f32 %v841, %v856
    %s866 = sld [smem:[#allocation8 + $0x183]]
    %v867 = vstv %s866
    %v868 = vmul.f32 %v867, %v200
    %v869 = vmul.f32 %v867, %v201
    %v870 = vmul.f32 %v867, %v202
    %v871 = vmul.f32 %v867, %v203
    %v876 = vrot.slane %v868, 1
    %v877 = vrot.slane %v869, 1
    %v878 = vsel %vm145, %v876, %v877
    %v879 = vrot.slane %v870, 1
    %v880 = vrot.slane %v871, 1
    %v881 = vsel %vm145, %v879, %v880
    %882 = vrot.lane.b32.xlu0 %v878, 127
    %v883 = vpop.permute.xlu0 %882
    %884 = vrot.lane.b32.xlu0 %v877, 127
    %v885 = vpop.permute.xlu0 %884
    %886 = vrot.lane.b32.xlu0 %v881, 127
    %v887 = vpop.permute.xlu0 %886
    %888 = vrot.lane.b32.xlu0 %v880, 127
    %v889 = vpop.permute.xlu0 %888
    %v894 = vadd.f32 %v862, %v883
    %v895 = vadd.f32 %v863, %v885
    %v896 = vadd.f32 %v864, %v887
    %v897 = vadd.f32 %v865, %v889
    %s898 = sld [smem:[#allocation8 + $0x4]]
    %v899 = vstv %s898
    %v900 = vmul.f32 %v899, %v306
    %v901 = vmul.f32 %v899, %v307
    %v902 = vmul.f32 %v899, %v308
    %v903 = vmul.f32 %v899, %v309
    %v904 = vadd.f32 %v618, %v900
    %v905 = vadd.f32 %v619, %v901
    %v906 = vadd.f32 %v620, %v902
    %v907 = vadd.f32 %v621, %v903
    %s908 = sld [smem:[#allocation8 + $0x5]]
    %v909 = vstv %s908
    %v910 = vmul.f32 %v909, %v306
    %v911 = vmul.f32 %v909, %v307
    %v912 = vmul.f32 %v909, %v308
    %v913 = vmul.f32 %v909, %v309
    %918 = vrot.lane.b32.xlu0 %v910, 127
    %v919 = vpop.permute.xlu0 %918
    %920 = vrot.lane.b32.xlu0 %v911, 127
    %v921 = vpop.permute.xlu0 %920
    %922 = vrot.lane.b32.xlu0 %v912, 127
    %v923 = vpop.permute.xlu0 %922
    %924 = vrot.lane.b32.xlu0 %v913, 127
    %v925 = vpop.permute.xlu0 %924
    %v930 = vadd.f32 %v904, %v919
    %v931 = vadd.f32 %v905, %v921
    %v932 = vadd.f32 %v906, %v923
    %v933 = vadd.f32 %v907, %v925
    %s934 = sld [smem:[#allocation8 + $0x6]]
    %v935 = vstv %s934
    %v936 = vmul.f32 %v935, %v306
    %v937 = vmul.f32 %v935, %v307
    %v938 = vmul.f32 %v935, %v308
    %v939 = vmul.f32 %v935, %v309
    %v944 = vrot.slane %v936, 1
    %v945 = vrot.slane %v937, 1
    %v946 = vsel %vm145, %v944, %v945
    %v947 = vrot.slane %v938, 1
    %v948 = vrot.slane %v939, 1
    %v949 = vsel %vm145, %v947, %v948
    %v954 = vadd.f32 %v930, %v946
    %v955 = vadd.f32 %v931, %v945
    %v956 = vadd.f32 %v932, %v949
    %v957 = vadd.f32 %v933, %v948
    %s958 = sld [smem:[#allocation8 + $0x7]]
    %v959 = vstv %s958
    %v960 = vmul.f32 %v959, %v306
    %v961 = vmul.f32 %v959, %v307
    %v962 = vmul.f32 %v959, %v308
    %v963 = vmul.f32 %v959, %v309
    %v968 = vrot.slane %v960, 1
    %v969 = vrot.slane %v961, 1
    %v970 = vsel %vm145, %v968, %v969
    %v971 = vrot.slane %v962, 1
    %v972 = vrot.slane %v963, 1
    %v973 = vsel %vm145, %v971, %v972
    %974 = vrot.lane.b32.xlu0 %v970, 127
    %v975 = vpop.permute.xlu0 %974
    %976 = vrot.lane.b32.xlu0 %v969, 127
    %v977 = vpop.permute.xlu0 %976
    %978 = vrot.lane.b32.xlu0 %v973, 127
    %v979 = vpop.permute.xlu0 %978
    %980 = vrot.lane.b32.xlu0 %v972, 127
    %v981 = vpop.permute.xlu0 %980
    %v986 = vadd.f32 %v954, %v975
    %v987 = vadd.f32 %v955, %v977
    %v988 = vadd.f32 %v956, %v979
    %v989 = vadd.f32 %v957, %v981
    %s990 = sld [smem:[#allocation8 + $0x84]]
    %v991 = vstv %s990
    %v992 = vmul.f32 %v991, %v306
    %v993 = vmul.f32 %v991, %v307
    %v994 = vmul.f32 %v991, %v308
    %v995 = vmul.f32 %v991, %v309
    %v996 = vadd.f32 %v710, %v992
    %v997 = vadd.f32 %v711, %v993
    %v998 = vadd.f32 %v712, %v994
    %v999 = vadd.f32 %v713, %v995
    %s1000 = sld [smem:[#allocation8 + $0x85]]
    %v1001 = vstv %s1000
    %v1002 = vmul.f32 %v1001, %v306
    %v1003 = vmul.f32 %v1001, %v307
    %v1004 = vmul.f32 %v1001, %v308
    %v1005 = vmul.f32 %v1001, %v309
    %1010 = vrot.lane.b32.xlu0 %v1002, 127
    %v1011 = vpop.permute.xlu0 %1010
    %1012 = vrot.lane.b32.xlu0 %v1003, 127
    %v1013 = vpop.permute.xlu0 %1012
    %1014 = vrot.lane.b32.xlu0 %v1004, 127
    %v1015 = vpop.permute.xlu0 %1014
    %1016 = vrot.lane.b32.xlu0 %v1005, 127
    %v1017 = vpop.permute.xlu0 %1016
    %v1022 = vadd.f32 %v996, %v1011
    %v1023 = vadd.f32 %v997, %v1013
    %v1024 = vadd.f32 %v998, %v1015
    %v1025 = vadd.f32 %v999, %v1017
    %s1026 = sld [smem:[#allocation8 + $0x86]]
    %v1027 = vstv %s1026
    %v1028 = vmul.f32 %v1027, %v306
    %v1029 = vmul.f32 %v1027, %v307
    %v1030 = vmul.f32 %v1027, %v308
    %v1031 = vmul.f32 %v1027, %v309
    %v1036 = vrot.slane %v1028, 1
    %v1037 = vrot.slane %v1029, 1
    %v1038 = vsel %vm145, %v1036, %v1037
    %v1039 = vrot.slane %v1030, 1
    %v1040 = vrot.slane %v1031, 1
    %v1041 = vsel %vm145, %v1039, %v1040
    %v1046 = vadd.f32 %v1022, %v1038
    %v1047 = vadd.f32 %v1023, %v1037
    %v1048 = vadd.f32 %v1024, %v1041
    %v1049 = vadd.f32 %v1025, %v1040
    %s1050 = sld [smem:[#allocation8 + $0x87]]
    %v1051 = vstv %s1050
    %v1052 = vmul.f32 %v1051, %v306
    %v1053 = vmul.f32 %v1051, %v307
    %v1054 = vmul.f32 %v1051, %v308
    %v1055 = vmul.f32 %v1051, %v309
    %v1060 = vrot.slane %v1052, 1
    %v1061 = vrot.slane %v1053, 1
    %v1062 = vsel %vm145, %v1060, %v1061
    %v1063 = vrot.slane %v1054, 1
    %v1064 = vrot.slane %v1055, 1
    %v1065 = vsel %vm145, %v1063, %v1064
    %1066 = vrot.lane.b32.xlu0 %v1062, 127
    %v1067 = vpop.permute.xlu0 %1066
    %1068 = vrot.lane.b32.xlu0 %v1061, 127
    %v1069 = vpop.permute.xlu0 %1068
    %1070 = vrot.lane.b32.xlu0 %v1065, 127
    %v1071 = vpop.permute.xlu0 %1070
    %1072 = vrot.lane.b32.xlu0 %v1064, 127
    %v1073 = vpop.permute.xlu0 %1072
    %v1078 = vadd.f32 %v1046, %v1067
    %v1079 = vadd.f32 %v1047, %v1069
    %v1080 = vadd.f32 %v1048, %v1071
    %v1081 = vadd.f32 %v1049, %v1073
    %s1082 = sld [smem:[#allocation8 + $0x104]]
    %v1083 = vstv %s1082
    %v1084 = vmul.f32 %v1083, %v306
    %v1085 = vmul.f32 %v1083, %v307
    %v1086 = vmul.f32 %v1083, %v308
    %v1087 = vmul.f32 %v1083, %v309
    %v1088 = vadd.f32 %v802, %v1084
    %v1089 = vadd.f32 %v803, %v1085
    %v1090 = vadd.f32 %v804, %v1086
    %v1091 = vadd.f32 %v805, %v1087
    %s1092 = sld [smem:[#allocation8 + $0x105]]
    %v1093 = vstv %s1092
    %v1094 = vmul.f32 %v1093, %v306
    %v1095 = vmul.f32 %v1093, %v307
    %v1096 = vmul.f32 %v1093, %v308
    %v1097 = vmul.f32 %v1093, %v309
    %1102 = vrot.lane.b32.xlu0 %v1094, 127
    %v1103 = vpop.permute.xlu0 %1102
    %1104 = vrot.lane.b32.xlu0 %v1095, 127
    %v1105 = vpop.permute.xlu0 %1104
    %1106 = vrot.lane.b32.xlu0 %v1096, 127
    %v1107 = vpop.permute.xlu0 %1106
    %1108 = vrot.lane.b32.xlu0 %v1097, 127
    %v1109 = vpop.permute.xlu0 %1108
    %v1114 = vadd.f32 %v1088, %v1103
    %v1115 = vadd.f32 %v1089, %v1105
    %v1116 = vadd.f32 %v1090, %v1107
    %v1117 = vadd.f32 %v1091, %v1109
    %s1118 = sld [smem:[#allocation8 + $0x106]]
    %v1119 = vstv %s1118
    %v1120 = vmul.f32 %v1119, %v306
    %v1121 = vmul.f32 %v1119, %v307
    %v1122 = vmul.f32 %v1119, %v308
    %v1123 = vmul.f32 %v1119, %v309
    %v1128 = vrot.slane %v1120, 1
    %v1129 = vrot.slane %v1121, 1
    %v1130 = vsel %vm145, %v1128, %v1129
    %v1131 = vrot.slane %v1122, 1
    %v1132 = vrot.slane %v1123, 1
    %v1133 = vsel %vm145, %v1131, %v1132
    %v1138 = vadd.f32 %v1114, %v1130
    %v1139 = vadd.f32 %v1115, %v1129
    %v1140 = vadd.f32 %v1116, %v1133
    %v1141 = vadd.f32 %v1117, %v1132
    %s1142 = sld [smem:[#allocation8 + $0x107]]
    %v1143 = vstv %s1142
    %v1144 = vmul.f32 %v1143, %v306
    %v1145 = vmul.f32 %v1143, %v307
    %v1146 = vmul.f32 %v1143, %v308
    %v1147 = vmul.f32 %v1143, %v309
    %v1152 = vrot.slane %v1144, 1
    %v1153 = vrot.slane %v1145, 1
    %v1154 = vsel %vm145, %v1152, %v1153
    %v1155 = vrot.slane %v1146, 1
    %v1156 = vrot.slane %v1147, 1
    %v1157 = vsel %vm145, %v1155, %v1156
    %1158 = vrot.lane.b32.xlu0 %v1154, 127
    %v1159 = vpop.permute.xlu0 %1158
    %1160 = vrot.lane.b32.xlu0 %v1153, 127
    %v1161 = vpop.permute.xlu0 %1160
    %1162 = vrot.lane.b32.xlu0 %v1157, 127
    %v1163 = vpop.permute.xlu0 %1162
    %1164 = vrot.lane.b32.xlu0 %v1156, 127
    %v1165 = vpop.permute.xlu0 %1164
    %v1170 = vadd.f32 %v1138, %v1159
    %v1171 = vadd.f32 %v1139, %v1161
    %v1172 = vadd.f32 %v1140, %v1163
    %v1173 = vadd.f32 %v1141, %v1165
    %s1174 = sld [smem:[#allocation8 + $0x184]]
    %v1175 = vstv %s1174
    %v1176 = vmul.f32 %v1175, %v306
    %v1177 = vmul.f32 %v1175, %v307
    %v1178 = vmul.f32 %v1175, %v308
    %v1179 = vmul.f32 %v1175, %v309
    %v1180 = vadd.f32 %v894, %v1176
    %v1181 = vadd.f32 %v895, %v1177
    %v1182 = vadd.f32 %v896, %v1178
    %v1183 = vadd.f32 %v897, %v1179
    %s1184 = sld [smem:[#allocation8 + $0x185]]
    %v1185 = vstv %s1184
    %v1186 = vmul.f32 %v1185, %v306
    %v1187 = vmul.f32 %v1185, %v307
    %v1188 = vmul.f32 %v1185, %v308
    %v1189 = vmul.f32 %v1185, %v309
    %1194 = vrot.lane.b32.xlu0 %v1186, 127
    %v1195 = vpop.permute.xlu0 %1194
    %1196 = vrot.lane.b32.xlu0 %v1187, 127
    %v1197 = vpop.permute.xlu0 %1196
    %1198 = vrot.lane.b32.xlu0 %v1188, 127
    %v1199 = vpop.permute.xlu0 %1198
    %1200 = vrot.lane.b32.xlu0 %v1189, 127
    %v1201 = vpop.permute.xlu0 %1200
    %v1206 = vadd.f32 %v1180, %v1195
    %v1207 = vadd.f32 %v1181, %v1197
    %v1208 = vadd.f32 %v1182, %v1199
    %v1209 = vadd.f32 %v1183, %v1201
    %s1210 = sld [smem:[#allocation8 + $0x186]]
    %v1211 = vstv %s1210
    %v1212 = vmul.f32 %v1211, %v306
    %v1213 = vmul.f32 %v1211, %v307
    %v1214 = vmul.f32 %v1211, %v308
    %v1215 = vmul.f32 %v1211, %v309
    %v1220 = vrot.slane %v1212, 1
    %v1221 = vrot.slane %v1213, 1
    %v1222 = vsel %vm145, %v1220, %v1221
    %v1223 = vrot.slane %v1214, 1
    %v1224 = vrot.slane %v1215, 1
    %v1225 = vsel %vm145, %v1223, %v1224
    %v1230 = vadd.f32 %v1206, %v1222
    %v1231 = vadd.f32 %v1207, %v1221
    %v1232 = vadd.f32 %v1208, %v1225
    %v1233 = vadd.f32 %v1209, %v1224
    %s1234 = sld [smem:[#allocation8 + $0x187]]
    %v1235 = vstv %s1234
    %v1236 = vmul.f32 %v1235, %v306
    %v1237 = vmul.f32 %v1235, %v307
    %v1238 = vmul.f32 %v1235, %v308
    %v1239 = vmul.f32 %v1235, %v309
    %v1244 = vrot.slane %v1236, 1
    %v1245 = vrot.slane %v1237, 1
    %v1246 = vsel %vm145, %v1244, %v1245
    %v1247 = vrot.slane %v1238, 1
    %v1248 = vrot.slane %v1239, 1
    %v1249 = vsel %vm145, %v1247, %v1248
    %1250 = vrot.lane.b32.xlu0 %v1246, 127
    %v1251 = vpop.permute.xlu0 %1250
    %1252 = vrot.lane.b32.xlu0 %v1245, 127
    %v1253 = vpop.permute.xlu0 %1252
    %1254 = vrot.lane.b32.xlu0 %v1249, 127
    %v1255 = vpop.permute.xlu0 %1254
    %1256 = vrot.lane.b32.xlu0 %v1248, 127
    %v1257 = vpop.permute.xlu0 %1256
    %v1262 = vadd.f32 %v1230, %v1251
    %v1263 = vadd.f32 %v1231, %v1253
    %v1264 = vadd.f32 %v1232, %v1255
    %v1265 = vadd.f32 %v1233, %v1257
    %s1266 = sld [smem:[#allocation8 + $0x8]]
    %v1267 = vstv %s1266
    %v1268 = vmul.f32 %v1267, %v412
    %v1269 = vmul.f32 %v1267, %v413
    %v1270 = vmul.f32 %v1267, %v414
    %v1271 = vmul.f32 %v1267, %v415
    %v1272 = vadd.f32 %v986, %v1268
    %v1273 = vadd.f32 %v987, %v1269
    %v1274 = vadd.f32 %v988, %v1270
    %v1275 = vadd.f32 %v989, %v1271
    %s1276 = sld [smem:[#allocation8 + $0x9]]
    %v1277 = vstv %s1276
    %v1278 = vmul.f32 %v1277, %v412
    %v1279 = vmul.f32 %v1277, %v413
    %v1280 = vmul.f32 %v1277, %v414
    %v1281 = vmul.f32 %v1277, %v415
    %1286 = vrot.lane.b32.xlu0 %v1278, 127
    %v1287 = vpop.permute.xlu0 %1286
    %1288 = vrot.lane.b32.xlu0 %v1279, 127
    %v1289 = vpop.permute.xlu0 %1288
    %1290 = vrot.lane.b32.xlu0 %v1280, 127
    %v1291 = vpop.permute.xlu0 %1290
    %1292 = vrot.lane.b32.xlu0 %v1281, 127
    %v1293 = vpop.permute.xlu0 %1292
    %v1298 = vadd.f32 %v1272, %v1287
    %v1299 = vadd.f32 %v1273, %v1289
    %v1300 = vadd.f32 %v1274, %v1291
    %v1301 = vadd.f32 %v1275, %v1293
    %s1302 = sld [smem:[#allocation8 + $0xa]]
    %v1303 = vstv %s1302
    %v1304 = vmul.f32 %v1303, %v412
    %v1305 = vmul.f32 %v1303, %v413
    %v1306 = vmul.f32 %v1303, %v414
    %v1307 = vmul.f32 %v1303, %v415
    %v1312 = vrot.slane %v1304, 1
    %v1313 = vrot.slane %v1305, 1
    %v1314 = vsel %vm145, %v1312, %v1313
    %v1315 = vrot.slane %v1306, 1
    %v1316 = vrot.slane %v1307, 1
    %v1317 = vsel %vm145, %v1315, %v1316
    %v1322 = vadd.f32 %v1298, %v1314
    %v1323 = vadd.f32 %v1299, %v1313
    %v1324 = vadd.f32 %v1300, %v1317
    %v1325 = vadd.f32 %v1301, %v1316
    %s1326 = sld [smem:[#allocation8 + $0xb]]
    %v1327 = vstv %s1326
    %v1328 = vmul.f32 %v1327, %v412
    %v1329 = vmul.f32 %v1327, %v413
    %v1330 = vmul.f32 %v1327, %v414
    %v1331 = vmul.f32 %v1327, %v415
    %v1336 = vrot.slane %v1328, 1
    %v1337 = vrot.slane %v1329, 1
    %v1338 = vsel %vm145, %v1336, %v1337
    %v1339 = vrot.slane %v1330, 1
    %v1340 = vrot.slane %v1331, 1
    %v1341 = vsel %vm145, %v1339, %v1340
    %1342 = vrot.lane.b32.xlu0 %v1338, 127
    %v1343 = vpop.permute.xlu0 %1342
    %1344 = vrot.lane.b32.xlu0 %v1337, 127
    %v1345 = vpop.permute.xlu0 %1344
    %1346 = vrot.lane.b32.xlu0 %v1341, 127
    %v1347 = vpop.permute.xlu0 %1346
    %1348 = vrot.lane.b32.xlu0 %v1340, 127
    %v1349 = vpop.permute.xlu0 %1348
    %v1354 = vadd.f32 %v1322, %v1343
    %v1355 = vadd.f32 %v1323, %v1345
    %v1356 = vadd.f32 %v1324, %v1347
    %v1357 = vadd.f32 %v1325, %v1349
    %s1358 = sld [smem:[#allocation8 + $0x88]]
    %v1359 = vstv %s1358
    %v1360 = vmul.f32 %v1359, %v412
    %v1361 = vmul.f32 %v1359, %v413
    %v1362 = vmul.f32 %v1359, %v414
    %v1363 = vmul.f32 %v1359, %v415
    %v1364 = vadd.f32 %v1078, %v1360
    %v1365 = vadd.f32 %v1079, %v1361
    %v1366 = vadd.f32 %v1080, %v1362
    %v1367 = vadd.f32 %v1081, %v1363
    %s1368 = sld [smem:[#allocation8 + $0x89]]
    %v1369 = vstv %s1368
    %v1370 = vmul.f32 %v1369, %v412
    %v1371 = vmul.f32 %v1369, %v413
    %v1372 = vmul.f32 %v1369, %v414
    %v1373 = vmul.f32 %v1369, %v415
    %1378 = vrot.lane.b32.xlu0 %v1370, 127
    %v1379 = vpop.permute.xlu0 %1378
    %1380 = vrot.lane.b32.xlu0 %v1371, 127
    %v1381 = vpop.permute.xlu0 %1380
    %1382 = vrot.lane.b32.xlu0 %v1372, 127
    %v1383 = vpop.permute.xlu0 %1382
    %1384 = vrot.lane.b32.xlu0 %v1373, 127
    %v1385 = vpop.permute.xlu0 %1384
    %v1390 = vadd.f32 %v1364, %v1379
    %v1391 = vadd.f32 %v1365, %v1381
    %v1392 = vadd.f32 %v1366, %v1383
    %v1393 = vadd.f32 %v1367, %v1385
    %s1394 = sld [smem:[#allocation8 + $0x8a]]
    %v1395 = vstv %s1394
    %v1396 = vmul.f32 %v1395, %v412
    %v1397 = vmul.f32 %v1395, %v413
    %v1398 = vmul.f32 %v1395, %v414
    %v1399 = vmul.f32 %v1395, %v415
    %v1404 = vrot.slane %v1396, 1
    %v1405 = vrot.slane %v1397, 1
    %v1406 = vsel %vm145, %v1404, %v1405
    %v1407 = vrot.slane %v1398, 1
    %v1408 = vrot.slane %v1399, 1
    %v1409 = vsel %vm145, %v1407, %v1408
    %v1414 = vadd.f32 %v1390, %v1406
    %v1415 = vadd.f32 %v1391, %v1405
    %v1416 = vadd.f32 %v1392, %v1409
    %v1417 = vadd.f32 %v1393, %v1408
    %s1418 = sld [smem:[#allocation8 + $0x8b]]
    %v1419 = vstv %s1418
    %v1420 = vmul.f32 %v1419, %v412
    %v1421 = vmul.f32 %v1419, %v413
    %v1422 = vmul.f32 %v1419, %v414
    %v1423 = vmul.f32 %v1419, %v415
    %v1428 = vrot.slane %v1420, 1
    %v1429 = vrot.slane %v1421, 1
    %v1430 = vsel %vm145, %v1428, %v1429
    %v1431 = vrot.slane %v1422, 1
    %v1432 = vrot.slane %v1423, 1
    %v1433 = vsel %vm145, %v1431, %v1432
    %1434 = vrot.lane.b32.xlu0 %v1430, 127
    %v1435 = vpop.permute.xlu0 %1434
    %1436 = vrot.lane.b32.xlu0 %v1429, 127
    %v1437 = vpop.permute.xlu0 %1436
    %1438 = vrot.lane.b32.xlu0 %v1433, 127
    %v1439 = vpop.permute.xlu0 %1438
    %1440 = vrot.lane.b32.xlu0 %v1432, 127
    %v1441 = vpop.permute.xlu0 %1440
    %v1446 = vadd.f32 %v1414, %v1435
    %v1447 = vadd.f32 %v1415, %v1437
    %v1448 = vadd.f32 %v1416, %v1439
    %v1449 = vadd.f32 %v1417, %v1441
    %s1450 = sld [smem:[#allocation8 + $0x108]]
    %v1451 = vstv %s1450
    %v1452 = vmul.f32 %v1451, %v412
    %v1453 = vmul.f32 %v1451, %v413
    %v1454 = vmul.f32 %v1451, %v414
    %v1455 = vmul.f32 %v1451, %v415
    %v1456 = vadd.f32 %v1170, %v1452
    %v1457 = vadd.f32 %v1171, %v1453
    %v1458 = vadd.f32 %v1172, %v1454
    %v1459 = vadd.f32 %v1173, %v1455
    %s1460 = sld [smem:[#allocation8 + $0x109]]
    %v1461 = vstv %s1460
    %v1462 = vmul.f32 %v1461, %v412
    %v1463 = vmul.f32 %v1461, %v413
    %v1464 = vmul.f32 %v1461, %v414
    %v1465 = vmul.f32 %v1461, %v415
    %1470 = vrot.lane.b32.xlu0 %v1462, 127
    %v1471 = vpop.permute.xlu0 %1470
    %1472 = vrot.lane.b32.xlu0 %v1463, 127
    %v1473 = vpop.permute.xlu0 %1472
    %1474 = vrot.lane.b32.xlu0 %v1464, 127
    %v1475 = vpop.permute.xlu0 %1474
    %1476 = vrot.lane.b32.xlu0 %v1465, 127
    %v1477 = vpop.permute.xlu0 %1476
    %v1482 = vadd.f32 %v1456, %v1471
    %v1483 = vadd.f32 %v1457, %v1473
    %v1484 = vadd.f32 %v1458, %v1475
    %v1485 = vadd.f32 %v1459, %v1477
    %s1486 = sld [smem:[#allocation8 + $0x10a]]
    %v1487 = vstv %s1486
    %v1488 = vmul.f32 %v1487, %v412
    %v1489 = vmul.f32 %v1487, %v413
    %v1490 = vmul.f32 %v1487, %v414
    %v1491 = vmul.f32 %v1487, %v415
    %v1496 = vrot.slane %v1488, 1
    %v1497 = vrot.slane %v1489, 1
    %v1498 = vsel %vm145, %v1496, %v1497
    %v1499 = vrot.slane %v1490, 1
    %v1500 = vrot.slane %v1491, 1
    %v1501 = vsel %vm145, %v1499, %v1500
    %v1506 = vadd.f32 %v1482, %v1498
    %v1507 = vadd.f32 %v1483, %v1497
    %v1508 = vadd.f32 %v1484, %v1501
    %v1509 = vadd.f32 %v1485, %v1500
    %s1510 = sld [smem:[#allocation8 + $0x10b]]
    %v1511 = vstv %s1510
    %v1512 = vmul.f32 %v1511, %v412
    %v1513 = vmul.f32 %v1511, %v413
    %v1514 = vmul.f32 %v1511, %v414
    %v1515 = vmul.f32 %v1511, %v415
    %v1520 = vrot.slane %v1512, 1
    %v1521 = vrot.slane %v1513, 1
    %v1522 = vsel %vm145, %v1520, %v1521
    %v1523 = vrot.slane %v1514, 1
    %v1524 = vrot.slane %v1515, 1
    %v1525 = vsel %vm145, %v1523, %v1524
    %1526 = vrot.lane.b32.xlu0 %v1522, 127
    %v1527 = vpop.permute.xlu0 %1526
    %1528 = vrot.lane.b32.xlu0 %v1521, 127
    %v1529 = vpop.permute.xlu0 %1528
    %1530 = vrot.lane.b32.xlu0 %v1525, 127
    %v1531 = vpop.permute.xlu0 %1530
    %1532 = vrot.lane.b32.xlu0 %v1524, 127
    %v1533 = vpop.permute.xlu0 %1532
    %v1538 = vadd.f32 %v1506, %v1527
    %v1539 = vadd.f32 %v1507, %v1529
    %v1540 = vadd.f32 %v1508, %v1531
    %v1541 = vadd.f32 %v1509, %v1533
    %s1542 = sld [smem:[#allocation8 + $0x188]]
    %v1543 = vstv %s1542
    %v1544 = vmul.f32 %v1543, %v412
    %v1545 = vmul.f32 %v1543, %v413
    %v1546 = vmul.f32 %v1543, %v414
    %v1547 = vmul.f32 %v1543, %v415
    %v1548 = vadd.f32 %v1262, %v1544
    %v1549 = vadd.f32 %v1263, %v1545
    %v1550 = vadd.f32 %v1264, %v1546
    %v1551 = vadd.f32 %v1265, %v1547
    %s1552 = sld [smem:[#allocation8 + $0x189]]
    %v1553 = vstv %s1552
    %v1554 = vmul.f32 %v1553, %v412
    %v1555 = vmul.f32 %v1553, %v413
    %v1556 = vmul.f32 %v1553, %v414
    %v1557 = vmul.f32 %v1553, %v415
    %1562 = vrot.lane.b32.xlu0 %v1554, 127
    %v1563 = vpop.permute.xlu0 %1562
    %1564 = vrot.lane.b32.xlu0 %v1555, 127
    %v1565 = vpop.permute.xlu0 %1564
    %1566 = vrot.lane.b32.xlu0 %v1556, 127
    %v1567 = vpop.permute.xlu0 %1566
    %1568 = vrot.lane.b32.xlu0 %v1557, 127
    %v1569 = vpop.permute.xlu0 %1568
    %v1574 = vadd.f32 %v1548, %v1563
    %v1575 = vadd.f32 %v1549, %v1565
    %v1576 = vadd.f32 %v1550, %v1567
    %v1577 = vadd.f32 %v1551, %v1569
    %s1578 = sld [smem:[#allocation8 + $0x18a]]
    %v1579 = vstv %s1578
    %v1580 = vmul.f32 %v1579, %v412
    %v1581 = vmul.f32 %v1579, %v413
    %v1582 = vmul.f32 %v1579, %v414
    %v1583 = vmul.f32 %v1579, %v415
    %v1588 = vrot.slane %v1580, 1
    %v1589 = vrot.slane %v1581, 1
    %v1590 = vsel %vm145, %v1588, %v1589
    %v1591 = vrot.slane %v1582, 1
    %v1592 = vrot.slane %v1583, 1
    %v1593 = vsel %vm145, %v1591, %v1592
    %v1598 = vadd.f32 %v1574, %v1590
    %v1599 = vadd.f32 %v1575, %v1589
    %v1600 = vadd.f32 %v1576, %v1593
    %v1601 = vadd.f32 %v1577, %v1592
    %s1602 = sld [smem:[#allocation8 + $0x18b]]
    %v1603 = vstv %s1602
    %v1604 = vmul.f32 %v1603, %v412
    %v1605 = vmul.f32 %v1603, %v413
    %v1606 = vmul.f32 %v1603, %v414
    %v1607 = vmul.f32 %v1603, %v415
    %v1612 = vrot.slane %v1604, 1
    %v1613 = vrot.slane %v1605, 1
    %v1614 = vsel %vm145, %v1612, %v1613
    %v1615 = vrot.slane %v1606, 1
    %v1616 = vrot.slane %v1607, 1
    %v1617 = vsel %vm145, %v1615, %v1616
    %1618 = vrot.lane.b32.xlu0 %v1614, 127
    %v1619 = vpop.permute.xlu0 %1618
    %1620 = vrot.lane.b32.xlu0 %v1613, 127
    %v1621 = vpop.permute.xlu0 %1620
    %1622 = vrot.lane.b32.xlu0 %v1617, 127
    %v1623 = vpop.permute.xlu0 %1622
    %1624 = vrot.lane.b32.xlu0 %v1616, 127
    %v1625 = vpop.permute.xlu0 %1624
    %v1630 = vadd.f32 %v1598, %v1619
    %v1631 = vadd.f32 %v1599, %v1621
    %v1632 = vadd.f32 %v1600, %v1623
    %v1633 = vadd.f32 %v1601, %v1625
    %s1634 = sld [smem:[#allocation8 + $0xc]]
    %v1635 = vstv %s1634
    %v1636 = vmul.f32 %v1635, %v518
    %v1637 = vmul.f32 %v1635, %v519
    %v1638 = vmul.f32 %v1635, %v520
    %v1639 = vmul.f32 %v1635, %v521
    %v1640 = vadd.f32 %v1354, %v1636
    %v1641 = vadd.f32 %v1355, %v1637
    %v1642 = vadd.f32 %v1356, %v1638
    %v1643 = vadd.f32 %v1357, %v1639
    %s1644 = sld [smem:[#allocation8 + $0xd]]
    %v1645 = vstv %s1644
    %v1646 = vmul.f32 %v1645, %v518
    %v1647 = vmul.f32 %v1645, %v519
    %v1648 = vmul.f32 %v1645, %v520
    %v1649 = vmul.f32 %v1645, %v521
    %1654 = vrot.lane.b32.xlu0 %v1646, 127
    %v1655 = vpop.permute.xlu0 %1654
    %1656 = vrot.lane.b32.xlu0 %v1647, 127
    %v1657 = vpop.permute.xlu0 %1656
    %1658 = vrot.lane.b32.xlu0 %v1648, 127
    %v1659 = vpop.permute.xlu0 %1658
    %1660 = vrot.lane.b32.xlu0 %v1649, 127
    %v1661 = vpop.permute.xlu0 %1660
    %v1666 = vadd.f32 %v1640, %v1655
    %v1667 = vadd.f32 %v1641, %v1657
    %v1668 = vadd.f32 %v1642, %v1659
    %v1669 = vadd.f32 %v1643, %v1661
    %s1670 = sld [smem:[#allocation8 + $0xe]]
    %v1671 = vstv %s1670
    %v1672 = vmul.f32 %v1671, %v518
    %v1673 = vmul.f32 %v1671, %v519
    %v1674 = vmul.f32 %v1671, %v520
    %v1675 = vmul.f32 %v1671, %v521
    %v1680 = vrot.slane %v1672, 1
    %v1681 = vrot.slane %v1673, 1
    %v1682 = vsel %vm145, %v1680, %v1681
    %v1683 = vrot.slane %v1674, 1
    %v1684 = vrot.slane %v1675, 1
    %v1685 = vsel %vm145, %v1683, %v1684
    %v1690 = vadd.f32 %v1666, %v1682
    %v1691 = vadd.f32 %v1667, %v1681
    %v1692 = vadd.f32 %v1668, %v1685
    %v1693 = vadd.f32 %v1669, %v1684
    %s1694 = sld [smem:[#allocation8 + $0xf]]
    %v1695 = vstv %s1694
    %v1696 = vmul.f32 %v1695, %v518
    %v1697 = vmul.f32 %v1695, %v519
    %v1698 = vmul.f32 %v1695, %v520
    %v1699 = vmul.f32 %v1695, %v521
    %v1704 = vrot.slane %v1696, 1
    %v1705 = vrot.slane %v1697, 1
    %v1706 = vsel %vm145, %v1704, %v1705
    %v1707 = vrot.slane %v1698, 1
    %v1708 = vrot.slane %v1699, 1
    %v1709 = vsel %vm145, %v1707, %v1708
    %1710 = vrot.lane.b32.xlu0 %v1706, 127
    %v1711 = vpop.permute.xlu0 %1710
    %1712 = vrot.lane.b32.xlu0 %v1705, 127
    %v1713 = vpop.permute.xlu0 %1712
    %1714 = vrot.lane.b32.xlu0 %v1709, 127
    %v1715 = vpop.permute.xlu0 %1714
    %1716 = vrot.lane.b32.xlu0 %v1708, 127
    %v1717 = vpop.permute.xlu0 %1716
    %v1722 = vadd.f32 %v1690, %v1711
    %v1723 = vadd.f32 %v1691, %v1713
    %v1724 = vadd.f32 %v1692, %v1715
    %v1725 = vadd.f32 %v1693, %v1717
    %s1726 = sld [smem:[#allocation8 + $0x8c]]
    %v1727 = vstv %s1726
    %v1728 = vmul.f32 %v1727, %v518
    %v1729 = vmul.f32 %v1727, %v519
    %v1730 = vmul.f32 %v1727, %v520
    %v1731 = vmul.f32 %v1727, %v521
    %v1732 = vadd.f32 %v1446, %v1728
    %v1733 = vadd.f32 %v1447, %v1729
    %v1734 = vadd.f32 %v1448, %v1730
    %v1735 = vadd.f32 %v1449, %v1731
    %s1736 = sld [smem:[#allocation8 + $0x8d]]
    %v1737 = vstv %s1736
    %v1738 = vmul.f32 %v1737, %v518
    %v1739 = vmul.f32 %v1737, %v519
    %v1740 = vmul.f32 %v1737, %v520
    %v1741 = vmul.f32 %v1737, %v521
    %1746 = vrot.lane.b32.xlu0 %v1738, 127
    %v1747 = vpop.permute.xlu0 %1746
    %1748 = vrot.lane.b32.xlu0 %v1739, 127
    %v1749 = vpop.permute.xlu0 %1748
    %1750 = vrot.lane.b32.xlu0 %v1740, 127
    %v1751 = vpop.permute.xlu0 %1750
    %1752 = vrot.lane.b32.xlu0 %v1741, 127
    %v1753 = vpop.permute.xlu0 %1752
    %v1758 = vadd.f32 %v1732, %v1747
    %v1759 = vadd.f32 %v1733, %v1749
    %v1760 = vadd.f32 %v1734, %v1751
    %v1761 = vadd.f32 %v1735, %v1753
    %s1762 = sld [smem:[#allocation8 + $0x8e]]
    %v1763 = vstv %s1762
    %v1764 = vmul.f32 %v1763, %v518
    %v1765 = vmul.f32 %v1763, %v519
    %v1766 = vmul.f32 %v1763, %v520
    %v1767 = vmul.f32 %v1763, %v521
    %v1772 = vrot.slane %v1764, 1
    %v1773 = vrot.slane %v1765, 1
    %v1774 = vsel %vm145, %v1772, %v1773
    %v1775 = vrot.slane %v1766, 1
    %v1776 = vrot.slane %v1767, 1
    %v1777 = vsel %vm145, %v1775, %v1776
    %v1782 = vadd.f32 %v1758, %v1774
    %v1783 = vadd.f32 %v1759, %v1773
    %v1784 = vadd.f32 %v1760, %v1777
    %v1785 = vadd.f32 %v1761, %v1776
    %s1786 = sld [smem:[#allocation8 + $0x8f]]
    %v1787 = vstv %s1786
    %v1788 = vmul.f32 %v1787, %v518
    %v1789 = vmul.f32 %v1787, %v519
    %v1790 = vmul.f32 %v1787, %v520
    %v1791 = vmul.f32 %v1787, %v521
    %v1796 = vrot.slane %v1788, 1
    %v1797 = vrot.slane %v1789, 1
    %v1798 = vsel %vm145, %v1796, %v1797
    %v1799 = vrot.slane %v1790, 1
    %v1800 = vrot.slane %v1791, 1
    %v1801 = vsel %vm145, %v1799, %v1800
    %1802 = vrot.lane.b32.xlu0 %v1798, 127
    %v1803 = vpop.permute.xlu0 %1802
    %1804 = vrot.lane.b32.xlu0 %v1797, 127
    %v1805 = vpop.permute.xlu0 %1804
    %1806 = vrot.lane.b32.xlu0 %v1801, 127
    %v1807 = vpop.permute.xlu0 %1806
    %1808 = vrot.lane.b32.xlu0 %v1800, 127
    %v1809 = vpop.permute.xlu0 %1808
    %v1814 = vadd.f32 %v1782, %v1803
    %v1815 = vadd.f32 %v1783, %v1805
    %v1816 = vadd.f32 %v1784, %v1807
    %v1817 = vadd.f32 %v1785, %v1809
    %s1818 = sld [smem:[#allocation8 + $0x10c]]
    %v1819 = vstv %s1818
    %v1820 = vmul.f32 %v1819, %v518
    %v1821 = vmul.f32 %v1819, %v519
    %v1822 = vmul.f32 %v1819, %v520
    %v1823 = vmul.f32 %v1819, %v521
    %v1824 = vadd.f32 %v1538, %v1820
    %v1825 = vadd.f32 %v1539, %v1821
    %v1826 = vadd.f32 %v1540, %v1822
    %v1827 = vadd.f32 %v1541, %v1823
    %s1828 = sld [smem:[#allocation8 + $0x10d]]
    %v1829 = vstv %s1828
    %v1830 = vmul.f32 %v1829, %v518
    %v1831 = vmul.f32 %v1829, %v519
    %v1832 = vmul.f32 %v1829, %v520
    %v1833 = vmul.f32 %v1829, %v521
    %1838 = vrot.lane.b32.xlu0 %v1830, 127
    %v1839 = vpop.permute.xlu0 %1838
    %1840 = vrot.lane.b32.xlu0 %v1831, 127
    %v1841 = vpop.permute.xlu0 %1840
    %1842 = vrot.lane.b32.xlu0 %v1832, 127
    %v1843 = vpop.permute.xlu0 %1842
    %1844 = vrot.lane.b32.xlu0 %v1833, 127
    %v1845 = vpop.permute.xlu0 %1844
    %v1850 = vadd.f32 %v1824, %v1839
    %v1851 = vadd.f32 %v1825, %v1841
    %v1852 = vadd.f32 %v1826, %v1843
    %v1853 = vadd.f32 %v1827, %v1845
    %s1854 = sld [smem:[#allocation8 + $0x10e]]
    %v1855 = vstv %s1854
    %v1856 = vmul.f32 %v1855, %v518
    %v1857 = vmul.f32 %v1855, %v519
    %v1858 = vmul.f32 %v1855, %v520
    %v1859 = vmul.f32 %v1855, %v521
    %v1864 = vrot.slane %v1856, 1
    %v1865 = vrot.slane %v1857, 1
    %v1866 = vsel %vm145, %v1864, %v1865
    %v1867 = vrot.slane %v1858, 1
    %v1868 = vrot.slane %v1859, 1
    %v1869 = vsel %vm145, %v1867, %v1868
    %v1874 = vadd.f32 %v1850, %v1866
    %v1875 = vadd.f32 %v1851, %v1865
    %v1876 = vadd.f32 %v1852, %v1869
    %v1877 = vadd.f32 %v1853, %v1868
    %s1878 = sld [smem:[#allocation8 + $0x10f]]
    %v1879 = vstv %s1878
    %v1880 = vmul.f32 %v1879, %v518
    %v1881 = vmul.f32 %v1879, %v519
    %v1882 = vmul.f32 %v1879, %v520
    %v1883 = vmul.f32 %v1879, %v521
    %v1888 = vrot.slane %v1880, 1
    %v1889 = vrot.slane %v1881, 1
    %v1890 = vsel %vm145, %v1888, %v1889
    %v1891 = vrot.slane %v1882, 1
    %v1892 = vrot.slane %v1883, 1
    %v1893 = vsel %vm145, %v1891, %v1892
    %1894 = vrot.lane.b32.xlu0 %v1890, 127
    %v1895 = vpop.permute.xlu0 %1894
    %1896 = vrot.lane.b32.xlu0 %v1889, 127
    %v1897 = vpop.permute.xlu0 %1896
    %1898 = vrot.lane.b32.xlu0 %v1893, 127
    %v1899 = vpop.permute.xlu0 %1898
    %1900 = vrot.lane.b32.xlu0 %v1892, 127
    %v1901 = vpop.permute.xlu0 %1900
    %v1906 = vadd.f32 %v1874, %v1895
    %v1907 = vadd.f32 %v1875, %v1897
    %v1908 = vadd.f32 %v1876, %v1899
    %v1909 = vadd.f32 %v1877, %v1901
    %s1910 = sld [smem:[#allocation8 + $0x18c]]
    %v1911 = vstv %s1910
    %v1912 = vmul.f32 %v1911, %v518
    %v1913 = vmul.f32 %v1911, %v519
    %v1914 = vmul.f32 %v1911, %v520
    %v1915 = vmul.f32 %v1911, %v521
    %v1916 = vadd.f32 %v1630, %v1912
    %v1917 = vadd.f32 %v1631, %v1913
    %v1918 = vadd.f32 %v1632, %v1914
    %v1919 = vadd.f32 %v1633, %v1915
    %s1920 = sld [smem:[#allocation8 + $0x18d]]
    %v1921 = vstv %s1920
    %v1922 = vmul.f32 %v1921, %v518
    %v1923 = vmul.f32 %v1921, %v519
    %v1924 = vmul.f32 %v1921, %v520
    %v1925 = vmul.f32 %v1921, %v521
    %1930 = vrot.lane.b32.xlu0 %v1922, 127
    %v1931 = vpop.permute.xlu0 %1930
    %1932 = vrot.lane.b32.xlu0 %v1923, 127
    %v1933 = vpop.permute.xlu0 %1932
    %1934 = vrot.lane.b32.xlu0 %v1924, 127
    %v1935 = vpop.permute.xlu0 %1934
    %1936 = vrot.lane.b32.xlu0 %v1925, 127
    %v1937 = vpop.permute.xlu0 %1936
    %v1942 = vadd.f32 %v1916, %v1931
    %v1943 = vadd.f32 %v1917, %v1933
    %v1944 = vadd.f32 %v1918, %v1935
    %v1945 = vadd.f32 %v1919, %v1937
    %s1946 = sld [smem:[#allocation8 + $0x18e]]
    %v1947 = vstv %s1946
    %v1948 = vmul.f32 %v1947, %v518
    %v1949 = vmul.f32 %v1947, %v519
    %v1950 = vmul.f32 %v1947, %v520
    %v1951 = vmul.f32 %v1947, %v521
    %v1956 = vrot.slane %v1948, 1
    %v1957 = vrot.slane %v1949, 1
    %v1958 = vsel %vm145, %v1956, %v1957
    %v1959 = vrot.slane %v1950, 1
    %v1960 = vrot.slane %v1951, 1
    %v1961 = vsel %vm145, %v1959, %v1960
    %v1966 = vadd.f32 %v1942, %v1958
    %v1967 = vadd.f32 %v1943, %v1957
    %v1968 = vadd.f32 %v1944, %v1961
    %v1969 = vadd.f32 %v1945, %v1960
    %s1970 = sld [smem:[#allocation8 + $0x18f]]
    %v1971 = vstv %s1970
    %v1972 = vmul.f32 %v1971, %v518
    %v1973 = vmul.f32 %v1971, %v519
    %v1974 = vmul.f32 %v1971, %v520
    %v1975 = vmul.f32 %v1971, %v521
    %v1980 = vrot.slane %v1972, 1
    %v1981 = vrot.slane %v1973, 1
    %v1982 = vsel %vm145, %v1980, %v1981
    %v1983 = vrot.slane %v1974, 1
    %v1984 = vrot.slane %v1975, 1
    %v1985 = vsel %vm145, %v1983, %v1984
    %1986 = vrot.lane.b32.xlu0 %v1982, 127
    %v1987 = vpop.permute.xlu0 %1986
    %1988 = vrot.lane.b32.xlu0 %v1981, 127
    %v1989 = vpop.permute.xlu0 %1988
    %1990 = vrot.lane.b32.xlu0 %v1985, 127
    %v1991 = vpop.permute.xlu0 %1990
    %1992 = vrot.lane.b32.xlu0 %v1984, 127
    %v1993 = vpop.permute.xlu0 %1992
    %v1998 = vadd.f32 %v1966, %v1987
    %v1999 = vadd.f32 %v1967, %v1989
    %v2000 = vadd.f32 %v1968, %v1991
    %v2001 = vadd.f32 %v1969, %v1993
    %vm2002 = vcmp.ge.f32.partialorder %v1722, 0.0
    %vm2003 = vcmp.ge.f32.partialorder %v1723, 0.0
    %vm2004 = vcmp.ge.f32.partialorder %v1724, 0.0
    %vm2005 = vcmp.ge.f32.partialorder %v1725, 0.0
    %v2006 = vmul.f32 %v1722, 0.01
    %v2007 = vmul.f32 %v1723, 0.01
    %v2008 = vmul.f32 %v1724, 0.01
    %v2009 = vmul.f32 %v1725, 0.01
    %v2010 = vsel %vm2002, %v1722, %v2006
    %v2011 = vsel %vm2003, %v1723, %v2007
    %v2012 = vsel %vm2004, %v1724, %v2008
    %v2013 = vsel %vm2005, %v1725, %v2009
    %vm2014 = vcmp.ge.f32.partialorder %v1814, 0.0
    %vm2015 = vcmp.ge.f32.partialorder %v1815, 0.0
    %vm2016 = vcmp.ge.f32.partialorder %v1816, 0.0
    %vm2017 = vcmp.ge.f32.partialorder %v1817, 0.0
    %v2018 = vmul.f32 %v1814, 0.01
    %v2019 = vmul.f32 %v1815, 0.01
    %v2020 = vmul.f32 %v1816, 0.01
    %v2021 = vmul.f32 %v1817, 0.01
    %v2022 = vsel %vm2014, %v1814, %v2018
    %v2023 = vsel %vm2015, %v1815, %v2019
    %v2024 = vsel %vm2016, %v1816, %v2020
    %v2025 = vsel %vm2017, %v1817, %v2021
    %vm2026 = vcmp.ge.f32.partialorder %v1906, 0.0
    %vm2027 = vcmp.ge.f32.partialorder %v1907, 0.0
    %vm2028 = vcmp.ge.f32.partialorder %v1908, 0.0
    %vm2029 = vcmp.ge.f32.partialorder %v1909, 0.0
    %v2030 = vmul.f32 %v1906, 0.01
    %v2031 = vmul.f32 %v1907, 0.01
    %v2032 = vmul.f32 %v1908, 0.01
    %v2033 = vmul.f32 %v1909, 0.01
    %v2034 = vsel %vm2026, %v1906, %v2030
    %v2035 = vsel %vm2027, %v1907, %v2031
    %v2036 = vsel %vm2028, %v1908, %v2032
    %v2037 = vsel %vm2029, %v1909, %v2033
    %vm2038 = vcmp.ge.f32.partialorder %v1998, 0.0
    %vm2039 = vcmp.ge.f32.partialorder %v1999, 0.0
    %vm2040 = vcmp.ge.f32.partialorder %v2000, 0.0
    %vm2041 = vcmp.ge.f32.partialorder %v2001, 0.0
    %v2042 = vmul.f32 %v1998, 0.01
    %v2043 = vmul.f32 %v1999, 0.01
    %v2044 = vmul.f32 %v2000, 0.01
    %v2045 = vmul.f32 %v2001, 0.01
    %v2046 = vsel %vm2038, %v1998, %v2042
    %v2047 = vsel %vm2039, %v1999, %v2043
    %v2048 = vsel %vm2040, %v2000, %v2044
    %v2049 = vsel %vm2041, %v2001, %v2045
    %s2050 = sld [smem:[#allocation2]]
    %v2051 = vstv %s2050
    %s2052 = sld [smem:[#allocation11]]
    %v2053 = vstv %s2052
    %v2054 = vmul.f32 %v2053, %v2010
    %v2055 = vmul.f32 %v2053, %v2011
    %v2056 = vmul.f32 %v2053, %v2012
    %v2057 = vmul.f32 %v2053, %v2013
    %v2058 = vadd.f32 %v2051, %v2054
    %v2059 = vadd.f32 %v2051, %v2055
    %v2060 = vadd.f32 %v2051, %v2056
    %v2061 = vadd.f32 %v2051, %v2057
    %s2062 = sld [smem:[#allocation11 + $0x1]]
    %v2063 = vstv %s2062
    %v2064 = vmul.f32 %v2063, %v2010
    %v2065 = vmul.f32 %v2063, %v2011
    %v2066 = vmul.f32 %v2063, %v2012
    %v2067 = vmul.f32 %v2063, %v2013
    %2072 = vrot.lane.b32.xlu0 %v2064, 127
    %v2073 = vpop.permute.xlu0 %2072
    %2074 = vrot.lane.b32.xlu0 %v2065, 127
    %v2075 = vpop.permute.xlu0 %2074
    %2076 = vrot.lane.b32.xlu0 %v2066, 127
    %v2077 = vpop.permute.xlu0 %2076
    %2078 = vrot.lane.b32.xlu0 %v2067, 127
    %v2079 = vpop.permute.xlu0 %2078
    %v2084 = vadd.f32 %v2058, %v2073
    %v2085 = vadd.f32 %v2059, %v2075
    %v2086 = vadd.f32 %v2060, %v2077
    %v2087 = vadd.f32 %v2061, %v2079
    %s2088 = sld [smem:[#allocation11 + $0x2]]
    %v2089 = vstv %s2088
    %v2090 = vmul.f32 %v2089, %v2010
    %v2091 = vmul.f32 %v2089, %v2011
    %v2092 = vmul.f32 %v2089, %v2012
    %v2093 = vmul.f32 %v2089, %v2013
    %v2098 = vrot.slane %v2090, 1
    %v2099 = vrot.slane %v2091, 1
    %v2100 = vsel %vm145, %v2098, %v2099
    %v2101 = vrot.slane %v2092, 1
    %v2102 = vrot.slane %v2093, 1
    %v2103 = vsel %vm145, %v2101, %v2102
    %v2108 = vadd.f32 %v2084, %v2100
    %v2109 = vadd.f32 %v2085, %v2099
    %v2110 = vadd.f32 %v2086, %v2103
    %v2111 = vadd.f32 %v2087, %v2102
    %s2112 = sld [smem:[#allocation11 + $0x3]]
    %v2113 = vstv %s2112
    %v2114 = vmul.f32 %v2113, %v2010
    %v2115 = vmul.f32 %v2113, %v2011
    %v2116 = vmul.f32 %v2113, %v2012
    %v2117 = vmul.f32 %v2113, %v2013
    %v2122 = vrot.slane %v2114, 1
    %v2123 = vrot.slane %v2115, 1
    %v2124 = vsel %vm145, %v2122, %v2123
    %v2125 = vrot.slane %v2116, 1
    %v2126 = vrot.slane %v2117, 1
    %v2127 = vsel %vm145, %v2125, %v2126
    %2128 = vrot.lane.b32.xlu0 %v2124, 127
    %v2129 = vpop.permute.xlu0 %2128
    %2130 = vrot.lane.b32.xlu0 %v2123, 127
    %v2131 = vpop.permute.xlu0 %2130
    %2132 = vrot.lane.b32.xlu0 %v2127, 127
    %v2133 = vpop.permute.xlu0 %2132
    %2134 = vrot.lane.b32.xlu0 %v2126, 127
    %v2135 = vpop.permute.xlu0 %2134
    %v2140 = vadd.f32 %v2108, %v2129
    %v2141 = vadd.f32 %v2109, %v2131
    %v2142 = vadd.f32 %v2110, %v2133
    %v2143 = vadd.f32 %v2111, %v2135
    %s2144 = sld [smem:[#allocation11 + $0x4]]
    %v2145 = vstv %s2144
    %v2146 = vmul.f32 %v2145, %v2022
    %v2147 = vmul.f32 %v2145, %v2023
    %v2148 = vmul.f32 %v2145, %v2024
    %v2149 = vmul.f32 %v2145, %v2025
    %v2150 = vadd.f32 %v2140, %v2146
    %v2151 = vadd.f32 %v2141, %v2147
    %v2152 = vadd.f32 %v2142, %v2148
    %v2153 = vadd.f32 %v2143, %v2149
    %s2154 = sld [smem:[#allocation11 + $0x5]]
    %v2155 = vstv %s2154
    %v2156 = vmul.f32 %v2155, %v2022
    %v2157 = vmul.f32 %v2155, %v2023
    %v2158 = vmul.f32 %v2155, %v2024
    %v2159 = vmul.f32 %v2155, %v2025
    %2164 = vrot.lane.b32.xlu0 %v2156, 127
    %v2165 = vpop.permute.xlu0 %2164
    %2166 = vrot.lane.b32.xlu0 %v2157, 127
    %v2167 = vpop.permute.xlu0 %2166
    %2168 = vrot.lane.b32.xlu0 %v2158, 127
    %v2169 = vpop.permute.xlu0 %2168
    %2170 = vrot.lane.b32.xlu0 %v2159, 127
    %v2171 = vpop.permute.xlu0 %2170
    %v2176 = vadd.f32 %v2150, %v2165
    %v2177 = vadd.f32 %v2151, %v2167
    %v2178 = vadd.f32 %v2152, %v2169
    %v2179 = vadd.f32 %v2153, %v2171
    %s2180 = sld [smem:[#allocation11 + $0x6]]
    %v2181 = vstv %s2180
    %v2182 = vmul.f32 %v2181, %v2022
    %v2183 = vmul.f32 %v2181, %v2023
    %v2184 = vmul.f32 %v2181, %v2024
    %v2185 = vmul.f32 %v2181, %v2025
    %v2190 = vrot.slane %v2182, 1
    %v2191 = vrot.slane %v2183, 1
    %v2192 = vsel %vm145, %v2190, %v2191
    %v2193 = vrot.slane %v2184, 1
    %v2194 = vrot.slane %v2185, 1
    %v2195 = vsel %vm145, %v2193, %v2194
    %v2200 = vadd.f32 %v2176, %v2192
    %v2201 = vadd.f32 %v2177, %v2191
    %v2202 = vadd.f32 %v2178, %v2195
    %v2203 = vadd.f32 %v2179, %v2194
    %s2204 = sld [smem:[#allocation11 + $0x7]]
    %v2205 = vstv %s2204
    %v2206 = vmul.f32 %v2205, %v2022
    %v2207 = vmul.f32 %v2205, %v2023
    %v2208 = vmul.f32 %v2205, %v2024
    %v2209 = vmul.f32 %v2205, %v2025
    %v2214 = vrot.slane %v2206, 1
    %v2215 = vrot.slane %v2207, 1
    %v2216 = vsel %vm145, %v2214, %v2215
    %v2217 = vrot.slane %v2208, 1
    %v2218 = vrot.slane %v2209, 1
    %v2219 = vsel %vm145, %v2217, %v2218
    %2220 = vrot.lane.b32.xlu0 %v2216, 127
    %v2221 = vpop.permute.xlu0 %2220
    %2222 = vrot.lane.b32.xlu0 %v2215, 127
    %v2223 = vpop.permute.xlu0 %2222
    %2224 = vrot.lane.b32.xlu0 %v2219, 127
    %v2225 = vpop.permute.xlu0 %2224
    %2226 = vrot.lane.b32.xlu0 %v2218, 127
    %v2227 = vpop.permute.xlu0 %2226
    %v2232 = vadd.f32 %v2200, %v2221
    %v2233 = vadd.f32 %v2201, %v2223
    %v2234 = vadd.f32 %v2202, %v2225
    %v2235 = vadd.f32 %v2203, %v2227
    %s2236 = sld [smem:[#allocation11 + $0x8]]
    %v2237 = vstv %s2236
    %v2238 = vmul.f32 %v2237, %v2034
    %v2239 = vmul.f32 %v2237, %v2035
    %v2240 = vmul.f32 %v2237, %v2036
    %v2241 = vmul.f32 %v2237, %v2037
    %v2242 = vadd.f32 %v2232, %v2238
    %v2243 = vadd.f32 %v2233, %v2239
    %v2244 = vadd.f32 %v2234, %v2240
    %v2245 = vadd.f32 %v2235, %v2241
    %s2246 = sld [smem:[#allocation11 + $0x9]]
    %v2247 = vstv %s2246
    %v2248 = vmul.f32 %v2247, %v2034
    %v2249 = vmul.f32 %v2247, %v2035
    %v2250 = vmul.f32 %v2247, %v2036
    %v2251 = vmul.f32 %v2247, %v2037
    %2256 = vrot.lane.b32.xlu0 %v2248, 127
    %v2257 = vpop.permute.xlu0 %2256
    %2258 = vrot.lane.b32.xlu0 %v2249, 127
    %v2259 = vpop.permute.xlu0 %2258
    %2260 = vrot.lane.b32.xlu0 %v2250, 127
    %v2261 = vpop.permute.xlu0 %2260
    %2262 = vrot.lane.b32.xlu0 %v2251, 127
    %v2263 = vpop.permute.xlu0 %2262
    %v2268 = vadd.f32 %v2242, %v2257
    %v2269 = vadd.f32 %v2243, %v2259
    %v2270 = vadd.f32 %v2244, %v2261
    %v2271 = vadd.f32 %v2245, %v2263
    %s2272 = sld [smem:[#allocation11 + $0xa]]
    %v2273 = vstv %s2272
    %v2274 = vmul.f32 %v2273, %v2034
    %v2275 = vmul.f32 %v2273, %v2035
    %v2276 = vmul.f32 %v2273, %v2036
    %v2277 = vmul.f32 %v2273, %v2037
    %v2282 = vrot.slane %v2274, 1
    %v2283 = vrot.slane %v2275, 1
    %v2284 = vsel %vm145, %v2282, %v2283
    %v2285 = vrot.slane %v2276, 1
    %v2286 = vrot.slane %v2277, 1
    %v2287 = vsel %vm145, %v2285, %v2286
    %v2292 = vadd.f32 %v2268, %v2284
    %v2293 = vadd.f32 %v2269, %v2283
    %v2294 = vadd.f32 %v2270, %v2287
    %v2295 = vadd.f32 %v2271, %v2286
    %s2296 = sld [smem:[#allocation11 + $0xb]]
    %v2297 = vstv %s2296
    %v2298 = vmul.f32 %v2297, %v2034
    %v2299 = vmul.f32 %v2297, %v2035
    %v2300 = vmul.f32 %v2297, %v2036
    %v2301 = vmul.f32 %v2297, %v2037
    %v2306 = vrot.slane %v2298, 1
    %v2307 = vrot.slane %v2299, 1
    %v2308 = vsel %vm145, %v2306, %v2307
    %v2309 = vrot.slane %v2300, 1
    %v2310 = vrot.slane %v2301, 1
    %v2311 = vsel %vm145, %v2309, %v2310
    %2312 = vrot.lane.b32.xlu0 %v2308, 127
    %v2313 = vpop.permute.xlu0 %2312
    %2314 = vrot.lane.b32.xlu0 %v2307, 127
    %v2315 = vpop.permute.xlu0 %2314
    %2316 = vrot.lane.b32.xlu0 %v2311, 127
    %v2317 = vpop.permute.xlu0 %2316
    %2318 = vrot.lane.b32.xlu0 %v2310, 127
    %v2319 = vpop.permute.xlu0 %2318
    %v2324 = vadd.f32 %v2292, %v2313
    %v2325 = vadd.f32 %v2293, %v2315
    %v2326 = vadd.f32 %v2294, %v2317
    %v2327 = vadd.f32 %v2295, %v2319
    %s2328 = sld [smem:[#allocation11 + $0xc]]
    %v2329 = vstv %s2328
    %v2330 = vmul.f32 %v2329, %v2046
    %v2331 = vmul.f32 %v2329, %v2047
    %v2332 = vmul.f32 %v2329, %v2048
    %v2333 = vmul.f32 %v2329, %v2049
    %v2334 = vadd.f32 %v2324, %v2330
    %v2335 = vadd.f32 %v2325, %v2331
    %v2336 = vadd.f32 %v2326, %v2332
    %v2337 = vadd.f32 %v2327, %v2333
    %s2338 = sld [smem:[#allocation11 + $0xd]]
    %v2339 = vstv %s2338
    %v2340 = vmul.f32 %v2339, %v2046
    %v2341 = vmul.f32 %v2339, %v2047
    %v2342 = vmul.f32 %v2339, %v2048
    %v2343 = vmul.f32 %v2339, %v2049
    %2348 = vrot.lane.b32.xlu0 %v2340, 127
    %v2349 = vpop.permute.xlu0 %2348
    %2350 = vrot.lane.b32.xlu0 %v2341, 127
    %v2351 = vpop.permute.xlu0 %2350
    %2352 = vrot.lane.b32.xlu0 %v2342, 127
    %v2353 = vpop.permute.xlu0 %2352
    %2354 = vrot.lane.b32.xlu0 %v2343, 127
    %v2355 = vpop.permute.xlu0 %2354
    %v2360 = vadd.f32 %v2334, %v2349
    %v2361 = vadd.f32 %v2335, %v2351
    %v2362 = vadd.f32 %v2336, %v2353
    %v2363 = vadd.f32 %v2337, %v2355
    %s2364 = sld [smem:[#allocation11 + $0xe]]
    %v2365 = vstv %s2364
    %v2366 = vmul.f32 %v2365, %v2046
    %v2367 = vmul.f32 %v2365, %v2047
    %v2368 = vmul.f32 %v2365, %v2048
    %v2369 = vmul.f32 %v2365, %v2049
    %v2374 = vrot.slane %v2366, 1
    %v2375 = vrot.slane %v2367, 1
    %v2376 = vsel %vm145, %v2374, %v2375
    %v2377 = vrot.slane %v2368, 1
    %v2378 = vrot.slane %v2369, 1
    %v2379 = vsel %vm145, %v2377, %v2378
    %v2384 = vadd.f32 %v2360, %v2376
    %v2385 = vadd.f32 %v2361, %v2375
    %v2386 = vadd.f32 %v2362, %v2379
    %v2387 = vadd.f32 %v2363, %v2378
    %s2388 = sld [smem:[#allocation11 + $0xf]]
    %v2389 = vstv %s2388
    %v2390 = vmul.f32 %v2389, %v2046
    %v2391 = vmul.f32 %v2389, %v2047
    %v2392 = vmul.f32 %v2389, %v2048
    %v2393 = vmul.f32 %v2389, %v2049
    %v2398 = vrot.slane %v2390, 1
    %v2399 = vrot.slane %v2391, 1
    %v2400 = vsel %vm145, %v2398, %v2399
    %v2401 = vrot.slane %v2392, 1
    %v2402 = vrot.slane %v2393, 1
    %v2403 = vsel %vm145, %v2401, %v2402
    %2404 = vrot.lane.b32.xlu0 %v2400, 127
    %v2405 = vpop.permute.xlu0 %2404
    %2406 = vrot.lane.b32.xlu0 %v2399, 127
    %v2407 = vpop.permute.xlu0 %2406
    %2408 = vrot.lane.b32.xlu0 %v2403, 127
    %v2409 = vpop.permute.xlu0 %2408
    %2410 = vrot.lane.b32.xlu0 %v2402, 127
    %v2411 = vpop.permute.xlu0 %2410
    %v2416 = vadd.f32 %v2384, %v2405
    %v2417 = vadd.f32 %v2385, %v2407
    %v2418 = vadd.f32 %v2386, %v2409
    %v2419 = vadd.f32 %v2387, %v2411
    %vm2420 = vcmp.ge.f32.partialorder %v2416, 0.0
    %vm2421 = vcmp.ge.f32.partialorder %v2417, 0.0
    %vm2422 = vcmp.ge.f32.partialorder %v2418, 0.0
    %vm2423 = vcmp.ge.f32.partialorder %v2419, 0.0
    %v2424 = vmul.f32 %v2416, 0.01
    %v2425 = vmul.f32 %v2417, 0.01
    %v2426 = vmul.f32 %v2418, 0.01
    %v2427 = vmul.f32 %v2419, 0.01
    %v2428 = vsel %vm2420, %v2416, %v2424
    %v2429 = vsel %vm2421, %v2417, %v2425
    %v2430 = vsel %vm2422, %v2418, %v2426
    %v2431 = vsel %vm2423, %v2419, %v2427
    %v2434 = vrot.slane %v2430, 7
    %vm2435 = vcmask 1041409
    %v2436 = vsel %vm2435, %v2434, %v2428
    %v2438 = vrot.slane %v2428, 1
    %v2439 = vsel %vm2435, %v2430, %v2438
    %2440 = vrot.lane.b32.xlu0 %v2439, 13
    %v2441 = vpop.permute.xlu0 %2440
    %v2443 = vrot.slane %v2428, 2
    %v2444 = vrot.slane %v2430, 1
    %v2445 = vsel %vm2435, %v2444, %v2443
    %2446 = vrot.lane.b32.xlu0 %v2445, 26
    %v2447 = vpop.permute.xlu0 %2446
    %v2449 = vrot.slane %v2428, 3
    %v2450 = vrot.slane %v2430, 2
    %v2451 = vsel %vm2435, %v2450, %v2449
    %2452 = vrot.lane.b32.xlu0 %v2451, 39
    %v2453 = vpop.permute.xlu0 %2452
    %v2455 = vrot.slane %v2428, 4
    %v2456 = vrot.slane %v2430, 3
    %v2457 = vsel %vm2435, %v2456, %v2455
    %2458 = vrot.lane.b32.xlu0 %v2457, 52
    %v2459 = vpop.permute.xlu0 %2458
    %v2461 = vrot.slane %v2428, 5
    %v2462 = vrot.slane %v2430, 4
    %v2463 = vsel %vm2435, %v2462, %v2461
    %2464 = vrot.lane.b32.xlu0 %v2463, 65
    %v2465 = vpop.permute.xlu0 %2464
    %v2467 = vrot.slane %v2428, 6
    %v2468 = vrot.slane %v2430, 5
    %v2469 = vsel %vm2435, %v2468, %v2467
    %2470 = vrot.lane.b32.xlu0 %v2469, 78
    %v2471 = vpop.permute.xlu0 %2470
    %v2473 = vrot.slane %v2428, 7
    %v2474 = vrot.slane %v2430, 6
    %v2475 = vsel %vm2435, %v2474, %v2473
    %2476 = vrot.lane.b32.xlu0 %v2475, 91
    %v2477 = vpop.permute.xlu0 %2476
    %v2481 = vrot.slane %v2431, 7
    %v2482 = vsel %vm2435, %v2481, %v2429
    %2483 = vrot.lane.b32.xlu0 %v2482, 104
    %v2484 = vpop.permute.xlu0 %2483
    %v2486 = vrot.slane %v2429, 1
    %v2487 = vsel %vm2435, %v2431, %v2486
    %2488 = vrot.lane.b32.xlu0 %v2487, 117
    %v2489 = vpop.permute.xlu0 %2488
    %v2491 = vrot.slane %v2429, 2
    %v2492 = vrot.slane %v2431, 1
    %v2493 = vsel %vm2435, %v2492, %v2491
    %2494 = vrot.lane.b32.xlu0 %v2493, 2
    %v2495 = vpop.permute.xlu0 %2494
    %v2497 = vrot.slane %v2429, 3
    %v2498 = vrot.slane %v2431, 2
    %v2499 = vsel %vm2435, %v2498, %v2497
    %2500 = vrot.lane.b32.xlu0 %v2499, 15
    %v2501 = vpop.permute.xlu0 %2500
    %v2503 = vrot.slane %v2429, 4
    %v2504 = vrot.slane %v2431, 3
    %v2505 = vsel %vm2435, %v2504, %v2503
    %2506 = vrot.lane.b32.xlu0 %v2505, 28
    %v2507 = vpop.permute.xlu0 %2506
    %vm2509 = vcmask 105472
    %v2510 = vsel %vm2509, %v2436, %v2441
    %vm2511 = vcmask 211968
    %v2512 = vsel %vm2511, %v2510, %v2447
    %vm2513 = vcmask 318464
    %v2514 = vsel %vm2513, %v2512, %v2453
    %vm2515 = vcmask 424960
    %v2516 = vsel %vm2515, %v2514, %v2459
    %vm2517 = vcmask 531456
    %v2518 = vsel %vm2517, %v2516, %v2465
    %vm2519 = vcmask 637952
    %v2520 = vsel %vm2519, %v2518, %v2471
    %vm2521 = vcmask 744448
    %v2522 = vsel %vm2521, %v2520, %v2477
    %vm2523 = vcmask 850944
    %v2524 = vsel %vm2523, %v2522, %v2484
    %vm2525 = vcmask 957440
    %v2526 = vsel %vm2525, %v2524, %v2489
    %vm2527 = vcmask 15360
    %v2528 = vsel %vm2527, %v2489, %v2495
    %vm2529 = vcmask 121856
    %v2530 = vsel %vm2529, %v2528, %v2501
    %vm2531 = vcmask 228352
    %v2532 = vsel %vm2531, %v2530, %v2507
    %v2533 = vld [vmem:[%s7] sm:$0xff]
    %v2534 = vld [vmem:[%s7 + $0x8] sm:$0xff]
    %v2535 = vld [vmem:[%s7 + $0x10] sm:$0xff]
    %v2536 = vld [vmem:[%s7 + $0x18] sm:$0xff]
    %v2537 = vld [vmem:[%s7 + $0x20] sm:$0xff]
    %v2538 = vld [vmem:[%s7 + $0x28] sm:$0xff]
    %v2539 = vld [vmem:[%s7 + $0x30] sm:$0xff]
    %v2540 = vld [vmem:[%s7 + $0x38] sm:$0xff]
    %v2541 = vld [vmem:[%s7 + $0x40] sm:$0xff]
    %v2542 = vld [vmem:[%s7 + $0x48] sm:$0xff]
    %v2543 = vld [vmem:[%s7 + $0x50] sm:$0xff]
    %v2544 = vld [vmem:[%s7 + $0x58] sm:$0xff]
    %v2545 = vld [vmem:[%s7 + $0x60] sm:$0xff]
    %v2546 = vld [vmem:[%s7 + $0x68] sm:$0xff]
    %v2547 = vld [vmem:[%s7 + $0x70] sm:$0xff]
    %v2548 = vld [vmem:[%s7 + $0x78] sm:$0xff]
    %v2549 = vld [vmem:[%s7 + $0x80] sm:$0xff]
    %v2550 = vld [vmem:[%s7 + $0x88] sm:$0xff]
    %v2551 = vld [vmem:[%s7 + $0x90] sm:$0xff]
    %v2552 = vld [vmem:[%s7 + $0x98] sm:$0xff]
    %v2553 = vld [vmem:[%s7 + $0xa0] sm:$0xff]
    %v2554 = vld [vmem:[%s7 + $0xa8] sm:$0x1]
    %v2555 = vld [vmem:[%s8] sm:$0x1]
    %v2557 = vlaneseq
    %v2558 = vshrl.u32 %v2557, 7
    %v2559 = vsub.s32 0, %v2558
    %v2560 = vrot.slane %v2555, %v2559
    %vm2562 = vcmask 334848
    %v2564 = vsel %vm2562, %v2532, 0
    %vm2566 = vcmask 1040384
    %v2568 = vsel %vm2566, %v2554, 0
    %2570 = vmatprep.subr.mxu0 0.0
    %2571 = vmatpush1.msra.mxu0 %v2548
    %2572 = vmatprep.subr.mxu0 0.0
    %2573 = vmatpush1.msra.mxu0 %v2547
    %2574 = vmatprep.subr.mxu0 0.0
    %2575 = vmatpush1.msra.mxu0 %v2546
    %2576 = vmatprep.subr.mxu0 0.0
    %2577 = vmatpush1.msra.mxu0 %v2545
    %2578 = vmatprep.subr.mxu0 0.0
    %2579 = vmatpush1.msra.mxu0 %v2544
    %2580 = vmatprep.subr.mxu0 0.0
    %2581 = vmatpush1.msra.mxu0 %v2543
    %2582 = vmatprep.subr.mxu0 0.0
    %2583 = vmatpush1.msra.mxu0 %v2542
    %2584 = vmatprep.subr.mxu0 0.0
    %2585 = vmatpush1.msra.mxu0 %v2541
    %2586 = vmatprep.subr.mxu0 0.0
    %2587 = vmatpush1.msra.mxu0 %v2540
    %2588 = vmatprep.subr.mxu0 0.0
    %2589 = vmatpush1.msra.mxu0 %v2539
    %2590 = vmatprep.subr.mxu0 0.0
    %2591 = vmatpush1.msra.mxu0 %v2538
    %2592 = vmatprep.subr.mxu0 0.0
    %2593 = vmatpush1.msra.mxu0 %v2537
    %2594 = vmatprep.subr.mxu0 0.0
    %2595 = vmatpush1.msra.mxu0 %v2536
    %2596 = vmatprep.subr.mxu0 0.0
    %2597 = vmatpush1.msra.mxu0 %v2535
    %2598 = vmatprep.subr.mxu0 0.0
    %2599 = vmatpush1.msra.mxu0 %v2534
    %2600 = vmatprep.subr.mxu0 0.0
    %2601 = vmatpush1.msra.mxu0 %v2533
    %2602 = vmatprep.subr.mxu0 0.0
    %2603 = vmatpush2.msra.mxu0 0.0
    %2604 = vmatprep.subr.mxu0 0.0
    %2605 = vmatpush2.msra.mxu0 0.0
    %2606 = vmatprep.subr.mxu0 0.0
    %2607 = vmatpush2.msra.mxu0 0.0
    %2608 = vmatprep.subr.mxu0 0.0
    %2609 = vmatpush2.msra.mxu0 0.0
    %2610 = vmatprep.subr.mxu0 0.0
    %2611 = vmatpush2.msra.mxu0 0.0
    %2612 = vmatprep.subr.mxu0 0.0
    %2613 = vmatpush2.msra.mxu0 0.0
    %2614 = vmatprep.subr.mxu0 0.0
    %2615 = vmatpush2.msra.mxu0 0.0
    %2616 = vmatprep.subr.mxu0 0.0
    %2617 = vmatpush2.msra.mxu0 0.0
    %2618 = vmatprep.subr.mxu0 0.0
    %2619 = vmatpush2.msra.mxu0 0.0
    %2620 = vmatprep.subr.mxu0 0.0
    %2621 = vmatpush2.msra.mxu0 0.0
    %2622 = vmatprep.subr.mxu0 0.0
    %2623 = vmatpush2.msra.mxu0 %v2568
    %2624 = vmatprep.subr.mxu0 0.0
    %2625 = vmatpush2.msra.mxu0 %v2553
    %2626 = vmatprep.subr.mxu0 0.0
    %2627 = vmatpush2.msra.mxu0 %v2552
    %2628 = vmatprep.subr.mxu0 0.0
    %2629 = vmatpush2.msra.mxu0 %v2551
    %2630 = vmatprep.subr.mxu0 0.0
    %2631 = vmatpush2.msra.mxu0 %v2550
    %2632 = vmatprep.subr.mxu0 0.0
    %2633 = vmatpush2.msra.mxu0 %v2549
    %2634 = vmatprep.mubr.f32.mxu0 %v2564
    %2635 = vmatmul.mubr.f32.gmra.mxu0 %v2526
    %v2636 = vpop.f32.mrf.mxu0
    %v2637 = vadd.f32 %v2560, %v2636
    %v2638 = vpop.f32.mrf.mxu0
    %2639 = vdwg.mxu0
    %vm2640 = vcmp.ge.f32.partialorder %v2637, 0.0
    %v2641 = vmul.f32 %v2637, 0.01
    %v2642 = vsel %vm2640, %v2637, %v2641
    %vm2643 = vcmask 50176
    %v2644 = vsel %vm2643, %v2642, -inf
    %v2645 = vrot.slane %v2644, 4
    %v2646 = vmax.f32 %v2644, %v2645
    %v2647 = vrot.slane %v2646, 2
    %v2648 = vmax.f32 %v2646, %v2647
    %v2649 = vrot.slane %v2648, 1
    %v2650 = vmax.f32 %v2648, %v2649
    %v2651 = vsub.f32 %v2642, %v2650
    %v2652 = vmul.f32 %v2651, 1.442695
    %v2653 = vpow.pop %v2652
    %v2654 = vsel %vm2643, %v2653, 0.0
    %v2655 = vrot.slane %v2654, 4
    %v2656 = vadd.f32 %v2654, %v2655
    %v2657 = vrot.slane %v2656, 2
    %v2658 = vadd.f32 %v2656, %v2657
    %v2659 = vrot.slane %v2658, 1
    %v2660 = vadd.f32 %v2658, %v2659
    %v2661 = vrcp.pop %v2660
    %v2662 = vmul.f32 %v2653, %v2661
    %2663 = vst.msk [vmem:[#allocation12] sm:$0x3] %vm2643, %v2662
    %vm2664 = vcmask 58424
    %2665 = vst.msk [vmem:[#allocation12] sm:$0x3] %vm2664, %v2642
    // Predicated region
    $region58: #{tpu_custom_call.1} parent=1 // pred_check
      _
    $region59: #{tpu_custom_call.1} parent=1 // pred_check_branch
      %2667 = sbr.rel (0) target = $region61
    $region60: #{tpu_custom_call.1} parent=1 // pred_region
      %s2669 = ssub.s32 32, 32
      %2670 = vsyncadd [#allocation4], %s2669
      %s2672 = sshll.u32 [#allocation12], 4
      %s2673 = int_to_ptr.vmem [resolvable:$true] %s2672
      %2675 = dma.vmem_to_hbm [thread:$0]  %s2673, 32, %s9, [#allocation4]
    $region61: #{tpu_custom_call.1} parent=1 // pred_fallthru
      _
    // Predicated region
    $region62: #{tpu_custom_call.1} parent=1 // pred_check
      _
    $region63: #{tpu_custom_call.1} parent=1 // pred_check_branch
      %2677 = sbr.rel (0) target = $region65
    $region64: #{tpu_custom_call.1} parent=1 // pred_region
      %2678 = dma.done [#allocation4], 32
    $region65: #{tpu_custom_call.1} parent=1 // pred_fallthru
      _
    %2679 = vsyncpa [#allocation4], 1
    %2680 = vsyncpa [#allocation5], 1
    %2681 = vsyncpa [#allocation7], 1
    %2682 = vsyncpa [#allocation10], 1

</llo_original>
